<compile_context>
chip_gen: v7x
topology: tpu7x:2x2x1
jax: 0.10.0
libtpu: 0.0.40
codegen_flags: <defaults>
</compile_context>

<pallas_src>
import jax
import jax.numpy as jnp
from jax import lax
from jax.experimental import pallas as pl
from jax.experimental.pallas import tpu as pltpu


# ----------------------------------------------------------------------------
# Pallas kernel: whole Critic forward (fc1/fc2 -> LSTM -> fc3/fc4)
# ----------------------------------------------------------------------------
def critic_kernel(
    # time-major, batch-padded, flattened data
    x_ref,       # (T*BP, S+2A)  [state | action | last_action]
    h0_ref,      # (BP, H)
    c0_ref,      # (BP, H)
    # fused, block-diagonal weights (packed in the wrapper)
    w_in_ref,    # (S+2A, 2H)   fc1|fc2 fused -> [h1 | x2]
    b_in_ref,    # (1, 2H)      [b1 | b2]
    w_mid_ref,   # (2H, 5H)     blockdiag(wi from x2, w3a from h1) -> [xg | pre3]
    b_mid_ref,   # (1, 5H)      [b_ih + b_hh | b3]
    wh_ref,      # (H, 4H)      recurrent weights, PyTorch gate order [i|f|g|o]
    w3b_ref,     # (H, H)       fc3 block acting on the LSTM outputs
    w4_ref,      # (1, H)       fc4 weight as a row (used with a lane reduce)
    b4_ref,      # (1, 1)
    # outputs
    q_ref,       # (T*BP, 1)
    hout_ref,    # (BP, H)
    cout_ref,    # (BP, H)
    # VMEM scratch
    mid_ref,     # (T*BP, 5H)   [xg (lanes 0:4H) | pre3 (lanes 4H:5H)]
):
    f32 = jnp.float32
    BP, H = h0_ref.shape
    TB = x_ref.shape[0]
    T = TB // BP

    def mm(a, b):
        return jnp.dot(a, b, preferred_element_type=f32)

    # ---- fused non-recurrent projections: 2 matmuls over all T*BP rows -----
    h1x2 = jnp.maximum(mm(x_ref[...], w_in_ref[...]) + b_in_ref[...], 0.0)
    mid_ref[...] = mm(h1x2, w_mid_ref[...]) + b_mid_ref[...]

    # ---- serial LSTM recurrence: one fused hidden matmul per step ----------
    wh = wh_ref[...]                                                # (H, 4H)
    h = h0_ref[...]
    c = c0_ref[...]
    hs = []
    # TODO(synk): hold wh resident in MXU weight-staging registers across the
    #             loop (pltpu.matmul_push_rhs / matmul_acc_lhs / matmul_pop)
    #             to drop the per-step weight push from the serial path.
    # TODO(synk): for long sequences / v7x switch to a T-chunked grid with h/c
    #             carried in scratch and lax.fori_loop(..., unroll=4..8).
    for t in range(T):
        row = t * BP
        gates = mid_ref[row:row + BP, 0:4 * H] + mm(h, wh)          # (BP, 4H)
        sig = jax.nn.sigmoid(gates)          # one full-vreg EUP pass (i,f,-,o)
        g_g = jnp.tanh(gates[:, 2 * H:3 * H])
        c = sig[:, H:2 * H] * c + sig[:, 0:H] * g_g
        h = sig[:, 3 * H:4 * H] * jnp.tanh(c)
        hs.append(h)

    hout_ref[...] = h
    cout_ref[...] = c

    # ---- batched head: fc3 (split concat) + fc4, single dense store --------
    hseq = jnp.concatenate(hs, axis=0)                              # (TB, H)
    x3 = jnp.maximum(mid_ref[:, 4 * H:] + mm(hseq, w3b_ref[...]), 0.0)
    q = jnp.sum(x3 * w4_ref[...], axis=-1, keepdims=True) + b4_ref[...]
    q_ref[...] = q.astype(q_ref.dtype)


# ----------------------------------------------------------------------------
# Parameter packing (block-diagonal fusion; done once, outside the hot path)
# ----------------------------------------------------------------------------
def pack_params(p, state_dim, action_dim, hidden_dim):
    S, A, H = state_dim, action_dim, hidden_dim
    f32 = jnp.float32

    # [state|action|last_action] @ w_in + b_in -> [h1 | x2]
    w_in = jnp.zeros((S + 2 * A, 2 * H), f32)
    w_in = w_in.at[0:S, 0:H].set(p["w1"][0:S])
    w_in = w_in.at[S:S + A, 0:H].set(p["w1"][S:S + A])
    w_in = w_in.at[0:S, H:2 * H].set(p["w2"][0:S])
    w_in = w_in.at[S + A:S + 2 * A, H:2 * H].set(p["w2"][S:S + A])
    b_in = jnp.concatenate([p["b1"], p["b2"]], axis=-1)

    # [h1 | x2] @ w_mid + b_mid -> [xg (input-gate proj) | pre3 (h1@W3a + b3)]
    w_mid = jnp.zeros((2 * H, 5 * H), f32)
    w_mid = w_mid.at[H:2 * H, 0:4 * H].set(p["wi"])
    w_mid = w_mid.at[0:H, 4 * H:5 * H].set(p["w3a"])
    b_mid = jnp.concatenate([p["bl"], p["b3"]], axis=-1)

    return dict(
        w_in=w_in, b_in=b_in, w_mid=w_mid, b_mid=b_mid,
        wh=p["wh"], w3b=p["w3b"], w4=p["w4"].reshape(1, H), b4=p["b4"],
    )


# ----------------------------------------------------------------------------
# Wrapper (glue: permutes, concat, batch padding, pallas_call)
# ----------------------------------------------------------------------------
@jax.jit
def critic_forward(packed, state, action, last_action, hidden_in):
    """state/action/last_action: (B, T, feat); hidden_in: ((1,B,H), (1,B,H))."""
    h0, c0 = hidden_in
    B, T, S = state.shape
    A = action.shape[-1]
    H = packed["wh"].shape[0]
    BP = ((B + 7) // 8) * 8          # pad batch to a sublane multiple of 8
    f32 = jnp.float32

    # batch-major -> time-major (the permute(1,0,2) of the PyTorch module),
    # zero-pad the batch, pre-concat all inputs, flatten to (T*BP, S+2A).
    x = jnp.concatenate([state, action, last_action], -1).astype(f32)
    x = jnp.transpose(x, (1, 0, 2))
    x = jnp.pad(x, ((0, 0), (0, BP - B), (0, 0))).reshape(T * BP, S + 2 * A)

    h0p = jnp.pad(h0[0].astype(f32), ((0, BP - B), (0, 0)))
    c0p = jnp.pad(c0[0].astype(f32), ((0, BP - B), (0, 0)))

    args = (
        x, h0p, c0p,
        packed["w_in"], packed["b_in"], packed["w_mid"], packed["b_mid"],
        packed["wh"], packed["w3b"], packed["w4"], packed["b4"],
    )

    vmem = pl.BlockSpec(memory_space=pltpu.MemorySpace.VMEM)
    q_flat, h_f, c_f = pl.pallas_call(
        critic_kernel,
        out_shape=(
            jax.ShapeDtypeStruct((T * BP, 1), f32),   # q (time-major, flat)
            jax.ShapeDtypeStruct((BP, H), f32),       # h_T
            jax.ShapeDtypeStruct((BP, H), f32),       # c_T
        ),
        in_specs=[vmem] * len(args),
        out_specs=(vmem, vmem, vmem),
        scratch_shapes=[
            pltpu.VMEM((T * BP, 5 * H), f32),         # [xg | pre3] precompute
        ],
    )(*args)

    q = q_flat.reshape(T, BP, 1)[:, :B, :].transpose(1, 0, 2)   # (B, T, 1)
    return q, (h_f[:B][None], c_f[:B][None])


# ----------------------------------------------------------------------------
# Deterministic synthetic parameters (matches nn.Module shapes, fused layout)
# ----------------------------------------------------------------------------
def init_params(key, state_dim, action_dim, hidden_dim):
    H = hidden_dim
    SA = state_dim + action_dim
    ks = jax.random.split(key, 12)

    def w(k, shape, fan_in):
        lim = 1.0 / jnp.sqrt(jnp.float32(fan_in))
        return jax.random.uniform(k, shape, jnp.float32, -lim, lim)

    p = {}
    # fc1 / fc2: Linear(S+A, H), stored as (in, out)
    p["w1"] = w(ks[0], (SA, H), SA)
    p["b1"] = w(ks[1], (1, H), SA)
    p["w2"] = w(ks[2], (SA, H), SA)
    p["b2"] = w(ks[3], (1, H), SA)
    # LSTM(H, H): fused (H, 4H) weights, PyTorch gate order [i|f|g|o];
    # bias = b_ih + b_hh combined.
    p["wi"] = w(ks[4], (H, 4 * H), H)
    p["wh"] = w(ks[5], (H, 4 * H), H)
    p["bl"] = w(ks[6], (1, 4 * H), H)
    # fc3: Linear(2H, H) split into the h1-block and the lstm-block; fc4: (H,1)
    p["w3a"] = w(ks[7], (H, H), 2 * H)
    p["w3b"] = w(ks[8], (H, H), 2 * H)
    p["b3"] = w(ks[9], (1, H), 2 * H)
    p["w4"] = w(ks[10], (H, 1), H)
    p["b4"] = w(ks[11], (1, 1), H)
    return p


# ----------------------------------------------------------------------------
# Pure-JAX reference (same math, no Pallas) for a correctness check
# ----------------------------------------------------------------------------
def critic_reference(p, state, action, last_action, hidden_in):
    h0, c0 = hidden_in
    H = p["wh"].shape[0]
    st = jnp.transpose(state, (1, 0, 2))
    at = jnp.transpose(action, (1, 0, 2))
    lat = jnp.transpose(last_action, (1, 0, 2))
    sa = jnp.concatenate([st, at], -1)
    sla = jnp.concatenate([st, lat], -1)
    h1 = jax.nn.relu(sa @ p["w1"] + p["b1"])
    x2 = jax.nn.relu(sla @ p["w2"] + p["b2"])

    def cell(carry, x_t):
        h, c = carry
        gates = x_t @ p["wi"] + h @ p["wh"] + p["bl"]
        gi = jax.nn.sigmoid(gates[:, 0:H])
        gf = jax.nn.sigmoid(gates[:, H:2 * H])
        gg = jnp.tanh(gates[:, 2 * H:3 * H])
        go = jax.nn.sigmoid(gates[:, 3 * H:4 * H])
        c2 = gf * c + gi * gg
        h2 = go * jnp.tanh(c2)
        return (h2, c2), h2

    (h_f, c_f), h_lstm = lax.scan(cell, (h0[0], c0[0]), x2)
    x3 = jax.nn.relu(h1 @ p["w3a"] + h_lstm @ p["w3b"] + p["b3"])
    q = x3 @ p["w4"] + p["b4"]
    return jnp.transpose(q, (1, 0, 2)), (h_f[None], c_f[None])


if __name__ == "__main__":
    STATE_DIM, ACTION_DIM, HIDDEN_DIM = 6, 3, 32
    B, T = 2, 8

    key = jax.random.PRNGKey(0)
    kp, ks, ka, kl, kh, kc = jax.random.split(key, 6)
    params = init_params(kp, STATE_DIM, ACTION_DIM, HIDDEN_DIM)
    packed = pack_params(params, STATE_DIM, ACTION_DIM, HIDDEN_DIM)

    state = jax.random.normal(ks, (B, T, STATE_DIM), jnp.float32)
    action = jax.random.normal(ka, (B, T, ACTION_DIM), jnp.float32)
    last_action = jax.random.normal(kl, (B, T, ACTION_DIM), jnp.float32)
    h0 = jax.random.normal(kh, (1, B, HIDDEN_DIM), jnp.float32)
    c0 = jax.random.normal(kc, (1, B, HIDDEN_DIM), jnp.float32)

    q, (h_out, c_out) = critic_forward(packed, state, action, last_action, (h0, c0))
    jax.block_until_ready((q, h_out, c_out))

    q_ref, (h_ref, c_ref) = critic_reference(params, state, action, last_action, (h0, c0))
    assert q.shape == (B, T, 1) and h_out.shape == (1, B, HIDDEN_DIM)
    assert jnp.allclose(q, q_ref, atol=1e-4, rtol=1e-4)
    assert jnp.allclose(h_out, h_ref, atol=1e-4, rtol=1e-4)
    assert jnp.allclose(c_out, c_ref, atol=1e-4, rtol=1e-4)

    print("KERNEL_OK")
</pallas_src>

<mosaic_0001>
module attributes {stable_mosaic.version = 11 : i64} {
  func.func @critic_kernel(%arg0: memref<64x12xf32, #tpu.memory_space<vmem>>, %arg1: memref<8x32xf32, #tpu.memory_space<vmem>>, %arg2: memref<8x32xf32, #tpu.memory_space<vmem>>, %arg3: memref<12x64xf32, #tpu.memory_space<vmem>>, %arg4: memref<1x64xf32, #tpu.memory_space<vmem>>, %arg5: memref<64x160xf32, #tpu.memory_space<vmem>>, %arg6: memref<1x160xf32, #tpu.memory_space<vmem>>, %arg7: memref<32x128xf32, #tpu.memory_space<vmem>>, %arg8: memref<32x32xf32, #tpu.memory_space<vmem>>, %arg9: memref<1x32xf32, #tpu.memory_space<vmem>>, %arg10: memref<1x1xf32, #tpu.memory_space<vmem>>, %arg11: memref<64x1xf32, #tpu.memory_space<vmem>>, %arg12: memref<8x32xf32, #tpu.memory_space<vmem>>, %arg13: memref<8x32xf32, #tpu.memory_space<vmem>>, %arg14: memref<64x160xf32, #tpu.memory_space<vmem>>) attributes {dimension_semantics = [], scalar_prefetch = 0 : i64, scratch_operands = 1 : i64, tpu.core_type = #tpu.core_type<tc>} {
    %c0 = arith.constant 0 : index
    %c0_0 = arith.constant 0 : index
    %0 = vector.load %arg0[%c0, %c0_0] : memref<64x12xf32, #tpu.memory_space<vmem>>, vector<64x12xf32>
    %c0_1 = arith.constant 0 : index
    %c0_2 = arith.constant 0 : index
    %1 = vector.load %arg3[%c0_1, %c0_2] : memref<12x64xf32, #tpu.memory_space<vmem>>, vector<12x64xf32>
    %cst = arith.constant dense<0.000000e+00> : vector<64x64xf32>
    %2 = tpu.matmul %0, %1, %cst {dimension_numbers = #tpu.dot_dimension_numbers<[1], [0], [0], [1], [0, 0, 1, 1], [], []>} : vector<64x12xf32>, vector<12x64xf32>, vector<64x64xf32> -> vector<64x64xf32>
    %c0_3 = arith.constant 0 : index
    %c0_4 = arith.constant 0 : index
    %3 = vector.load %arg4[%c0_3, %c0_4] : memref<1x64xf32, #tpu.memory_space<vmem>>, vector<1x64xf32>
    %4 = vector.broadcast %3 : vector<1x64xf32> to vector<64x64xf32>
    %5 = arith.addf %2, %4 : vector<64x64xf32>
    %cst_5 = arith.constant 0.000000e+00 : f32
    %6 = vector.broadcast %cst_5 : f32 to vector<64x64xf32>
    %7 = arith.maximumf %5, %6 : vector<64x64xf32>
    %c0_6 = arith.constant 0 : index
    %c0_7 = arith.constant 0 : index
    %8 = vector.load %arg5[%c0_6, %c0_7] : memref<64x160xf32, #tpu.memory_space<vmem>>, vector<64x160xf32>
    %cst_8 = arith.constant dense<0.000000e+00> : vector<64x160xf32>
    %9 = tpu.matmul %7, %8, %cst_8 {dimension_numbers = #tpu.dot_dimension_numbers<[1], [0], [0], [1], [0, 0, 1, 1], [], []>} : vector<64x64xf32>, vector<64x160xf32>, vector<64x160xf32> -> vector<64x160xf32>
    %c0_9 = arith.constant 0 : index
    %c0_10 = arith.constant 0 : index
    %10 = vector.load %arg6[%c0_9, %c0_10] : memref<1x160xf32, #tpu.memory_space<vmem>>, vector<1x160xf32>
    %11 = vector.broadcast %10 : vector<1x160xf32> to vector<64x160xf32>
    %12 = arith.addf %9, %11 : vector<64x160xf32>
    %c0_11 = arith.constant 0 : index
    %c0_12 = arith.constant 0 : index
    %13 = vector.load %arg14[%c0_11, %c0_12] : memref<64x160xf32, #tpu.memory_space<vmem>>, vector<64x160xf32>
    tpu.vector_store %arg14[%c0_11, %c0_12], %12 {strides = array<i32>} : memref<64x160xf32, #tpu.memory_space<vmem>>, vector<64x160xf32>,
    %c0_13 = arith.constant 0 : index
    %c0_14 = arith.constant 0 : index
    %14 = vector.load %arg7[%c0_13, %c0_14] : memref<32x128xf32, #tpu.memory_space<vmem>>, vector<32x128xf32>
    %c0_15 = arith.constant 0 : index
    %c0_16 = arith.constant 0 : index
    %15 = vector.load %arg1[%c0_15, %c0_16] : memref<8x32xf32, #tpu.memory_space<vmem>>, vector<8x32xf32>
    %c0_17 = arith.constant 0 : index
    %c0_18 = arith.constant 0 : index
    %16 = vector.load %arg2[%c0_17, %c0_18] : memref<8x32xf32, #tpu.memory_space<vmem>>, vector<8x32xf32>
    %c0_19 = arith.constant 0 : index
    %c0_20 = arith.constant 0 : index
    %17 = vector.load %arg14[%c0_19, %c0_20] : memref<64x160xf32, #tpu.memory_space<vmem>>, vector<8x128xf32>
    %cst_21 = arith.constant dense<0.000000e+00> : vector<8x128xf32>
    %18 = tpu.matmul %15, %14, %cst_21 {dimension_numbers = #tpu.dot_dimension_numbers<[1], [0], [0], [1], [0, 0, 1, 1], [], []>} : vector<8x32xf32>, vector<32x128xf32>, vector<8x128xf32> -> vector<8x128xf32>
    %19 = arith.addf %17, %18 : vector<8x128xf32>
    %20 = arith.negf %19 : vector<8x128xf32>
    %21 = math.exp %20 : vector<8x128xf32>
    %cst_22 = arith.constant 1.000000e+00 : f32
    %22 = vector.broadcast %cst_22 : f32 to vector<8x128xf32>
    %23 = arith.addf %22, %21 : vector<8x128xf32>
    %24 = arith.divf %22, %23 : vector<8x128xf32>
    %25 = vector.extract_strided_slice %19 {offsets = [0, 64], sizes = [8, 32], strides = [1, 1]} : vector<8x128xf32> to vector<8x32xf32>
    %26 = math.tanh %25 : vector<8x32xf32>
    %27 = vector.extract_strided_slice %24 {offsets = [0, 32], sizes = [8, 32], strides = [1, 1]} : vector<8x128xf32> to vector<8x32xf32>
    %28 = arith.mulf %27, %16 : vector<8x32xf32>
    %29 = vector.extract_strided_slice %24 {offsets = [0, 0], sizes = [8, 32], strides = [1, 1]} : vector<8x128xf32> to vector<8x32xf32>
    %30 = arith.mulf %29, %26 : vector<8x32xf32>
    %31 = arith.addf %28, %30 : vector<8x32xf32>
    %32 = vector.extract_strided_slice %24 {offsets = [0, 96], sizes = [8, 32], strides = [1, 1]} : vector<8x128xf32> to vector<8x32xf32>
    %33 = math.tanh %31 : vector<8x32xf32>
    %34 = arith.mulf %32, %33 : vector<8x32xf32>
    %c8 = arith.constant 8 : index
    %c0_23 = arith.constant 0 : index
    %35 = vector.load %arg14[%c8, %c0_23] : memref<64x160xf32, #tpu.memory_space<vmem>>, vector<8x128xf32>
    %cst_24 = arith.constant dense<0.000000e+00> : vector<8x128xf32>
    %36 = tpu.matmul %34, %14, %cst_24 {dimension_numbers = #tpu.dot_dimension_numbers<[1], [0], [0], [1], [0, 0, 1, 1], [], []>} : vector<8x32xf32>, vector<32x128xf32>, vector<8x128xf32> -> vector<8x128xf32>
    %37 = arith.addf %35, %36 : vector<8x128xf32>
    %38 = arith.negf %37 : vector<8x128xf32>
    %39 = math.exp %38 : vector<8x128xf32>
    %cst_25 = arith.constant 1.000000e+00 : f32
    %40 = vector.broadcast %cst_25 : f32 to vector<8x128xf32>
    %41 = arith.addf %40, %39 : vector<8x128xf32>
    %42 = arith.divf %40, %41 : vector<8x128xf32>
    %43 = vector.extract_strided_slice %37 {offsets = [0, 64], sizes = [8, 32], strides = [1, 1]} : vector<8x128xf32> to vector<8x32xf32>
    %44 = math.tanh %43 : vector<8x32xf32>
    %45 = vector.extract_strided_slice %42 {offsets = [0, 32], sizes = [8, 32], strides = [1, 1]} : vector<8x128xf32> to vector<8x32xf32>
    %46 = arith.mulf %45, %31 : vector<8x32xf32>
    %47 = vector.extract_strided_slice %42 {offsets = [0, 0], sizes = [8, 32], strides = [1, 1]} : vector<8x128xf32> to vector<8x32xf32>
    %48 = arith.mulf %47, %44 : vector<8x32xf32>
    %49 = arith.addf %46, %48 : vector<8x32xf32>
    %50 = vector.extract_strided_slice %42 {offsets = [0, 96], sizes = [8, 32], strides = [1, 1]} : vector<8x128xf32> to vector<8x32xf32>
    %51 = math.tanh %49 : vector<8x32xf32>
    %52 = arith.mulf %50, %51 : vector<8x32xf32>
    %c16 = arith.constant 16 : index
    %c0_26 = arith.constant 0 : index
    %53 = vector.load %arg14[%c16, %c0_26] : memref<64x160xf32, #tpu.memory_space<vmem>>, vector<8x128xf32>
    %cst_27 = arith.constant dense<0.000000e+00> : vector<8x128xf32>
    %54 = tpu.matmul %52, %14, %cst_27 {dimension_numbers = #tpu.dot_dimension_numbers<[1], [0], [0], [1], [0, 0, 1, 1], [], []>} : vector<8x32xf32>, vector<32x128xf32>, vector<8x128xf32> -> vector<8x128xf32>
    %55 = arith.addf %53, %54 : vector<8x128xf32>
    %56 = arith.negf %55 : vector<8x128xf32>
    %57 = math.exp %56 : vector<8x128xf32>
    %cst_28 = arith.constant 1.000000e+00 : f32
    %58 = vector.broadcast %cst_28 : f32 to vector<8x128xf32>
    %59 = arith.addf %58, %57 : vector<8x128xf32>
    %60 = arith.divf %58, %59 : vector<8x128xf32>
    %61 = vector.extract_strided_slice %55 {offsets = [0, 64], sizes = [8, 32], strides = [1, 1]} : vector<8x128xf32> to vector<8x32xf32>
    %62 = math.tanh %61 : vector<8x32xf32>
    %63 = vector.extract_strided_slice %60 {offsets = [0, 32], sizes = [8, 32], strides = [1, 1]} : vector<8x128xf32> to vector<8x32xf32>
    %64 = arith.mulf %63, %49 : vector<8x32xf32>
    %65 = vector.extract_strided_slice %60 {offsets = [0, 0], sizes = [8, 32], strides = [1, 1]} : vector<8x128xf32> to vector<8x32xf32>
    %66 = arith.mulf %65, %62 : vector<8x32xf32>
    %67 = arith.addf %64, %66 : vector<8x32xf32>
    %68 = vector.extract_strided_slice %60 {offsets = [0, 96], sizes = [8, 32], strides = [1, 1]} : vector<8x128xf32> to vector<8x32xf32>
    %69 = math.tanh %67 : vector<8x32xf32>
    %70 = arith.mulf %68, %69 : vector<8x32xf32>
    %c24 = arith.constant 24 : index
    %c0_29 = arith.constant 0 : index
    %71 = vector.load %arg14[%c24, %c0_29] : memref<64x160xf32, #tpu.memory_space<vmem>>, vector<8x128xf32>
    %cst_30 = arith.constant dense<0.000000e+00> : vector<8x128xf32>
    %72 = tpu.matmul %70, %14, %cst_30 {dimension_numbers = #tpu.dot_dimension_numbers<[1], [0], [0], [1], [0, 0, 1, 1], [], []>} : vector<8x32xf32>, vector<32x128xf32>, vector<8x128xf32> -> vector<8x128xf32>
    %73 = arith.addf %71, %72 : vector<8x128xf32>
    %74 = arith.negf %73 : vector<8x128xf32>
    %75 = math.exp %74 : vector<8x128xf32>
    %cst_31 = arith.constant 1.000000e+00 : f32
    %76 = vector.broadcast %cst_31 : f32 to vector<8x128xf32>
    %77 = arith.addf %76, %75 : vector<8x128xf32>
    %78 = arith.divf %76, %77 : vector<8x128xf32>
    %79 = vector.extract_strided_slice %73 {offsets = [0, 64], sizes = [8, 32], strides = [1, 1]} : vector<8x128xf32> to vector<8x32xf32>
    %80 = math.tanh %79 : vector<8x32xf32>
    %81 = vector.extract_strided_slice %78 {offsets = [0, 32], sizes = [8, 32], strides = [1, 1]} : vector<8x128xf32> to vector<8x32xf32>
    %82 = arith.mulf %81, %67 : vector<8x32xf32>
    %83 = vector.extract_strided_slice %78 {offsets = [0, 0], sizes = [8, 32], strides = [1, 1]} : vector<8x128xf32> to vector<8x32xf32>
    %84 = arith.mulf %83, %80 : vector<8x32xf32>
    %85 = arith.addf %82, %84 : vector<8x32xf32>
    %86 = vector.extract_strided_slice %78 {offsets = [0, 96], sizes = [8, 32], strides = [1, 1]} : vector<8x128xf32> to vector<8x32xf32>
    %87 = math.tanh %85 : vector<8x32xf32>
    %88 = arith.mulf %86, %87 : vector<8x32xf32>
    %c32 = arith.constant 32 : index
    %c0_32 = arith.constant 0 : index
    %89 = vector.load %arg14[%c32, %c0_32] : memref<64x160xf32, #tpu.memory_space<vmem>>, vector<8x128xf32>
    %cst_33 = arith.constant dense<0.000000e+00> : vector<8x128xf32>
    %90 = tpu.matmul %88, %14, %cst_33 {dimension_numbers = #tpu.dot_dimension_numbers<[1], [0], [0], [1], [0, 0, 1, 1], [], []>} : vector<8x32xf32>, vector<32x128xf32>, vector<8x128xf32> -> vector<8x128xf32>
    %91 = arith.addf %89, %90 : vector<8x128xf32>
    %92 = arith.negf %91 : vector<8x128xf32>
    %93 = math.exp %92 : vector<8x128xf32>
    %cst_34 = arith.constant 1.000000e+00 : f32
    %94 = vector.broadcast %cst_34 : f32 to vector<8x128xf32>
    %95 = arith.addf %94, %93 : vector<8x128xf32>
    %96 = arith.divf %94, %95 : vector<8x128xf32>
    %97 = vector.extract_strided_slice %91 {offsets = [0, 64], sizes = [8, 32], strides = [1, 1]} : vector<8x128xf32> to vector<8x32xf32>
    %98 = math.tanh %97 : vector<8x32xf32>
    %99 = vector.extract_strided_slice %96 {offsets = [0, 32], sizes = [8, 32], strides = [1, 1]} : vector<8x128xf32> to vector<8x32xf32>
    %100 = arith.mulf %99, %85 : vector<8x32xf32>
    %101 = vector.extract_strided_slice %96 {offsets = [0, 0], sizes = [8, 32], strides = [1, 1]} : vector<8x128xf32> to vector<8x32xf32>
    %102 = arith.mulf %101, %98 : vector<8x32xf32>
    %103 = arith.addf %100, %102 : vector<8x32xf32>
    %104 = vector.extract_strided_slice %96 {offsets = [0, 96], sizes = [8, 32], strides = [1, 1]} : vector<8x128xf32> to vector<8x32xf32>
    %105 = math.tanh %103 : vector<8x32xf32>
    %106 = arith.mulf %104, %105 : vector<8x32xf32>
    %c40 = arith.constant 40 : index
    %c0_35 = arith.constant 0 : index
    %107 = vector.load %arg14[%c40, %c0_35] : memref<64x160xf32, #tpu.memory_space<vmem>>, vector<8x128xf32>
    %cst_36 = arith.constant dense<0.000000e+00> : vector<8x128xf32>
    %108 = tpu.matmul %106, %14, %cst_36 {dimension_numbers = #tpu.dot_dimension_numbers<[1], [0], [0], [1], [0, 0, 1, 1], [], []>} : vector<8x32xf32>, vector<32x128xf32>, vector<8x128xf32> -> vector<8x128xf32>
    %109 = arith.addf %107, %108 : vector<8x128xf32>
    %110 = arith.negf %109 : vector<8x128xf32>
    %111 = math.exp %110 : vector<8x128xf32>
    %cst_37 = arith.constant 1.000000e+00 : f32
    %112 = vector.broadcast %cst_37 : f32 to vector<8x128xf32>
    %113 = arith.addf %112, %111 : vector<8x128xf32>
    %114 = arith.divf %112, %113 : vector<8x128xf32>
    %115 = vector.extract_strided_slice %109 {offsets = [0, 64], sizes = [8, 32], strides = [1, 1]} : vector<8x128xf32> to vector<8x32xf32>
    %116 = math.tanh %115 : vector<8x32xf32>
    %117 = vector.extract_strided_slice %114 {offsets = [0, 32], sizes = [8, 32], strides = [1, 1]} : vector<8x128xf32> to vector<8x32xf32>
    %118 = arith.mulf %117, %103 : vector<8x32xf32>
    %119 = vector.extract_strided_slice %114 {offsets = [0, 0], sizes = [8, 32], strides = [1, 1]} : vector<8x128xf32> to vector<8x32xf32>
    %120 = arith.mulf %119, %116 : vector<8x32xf32>
    %121 = arith.addf %118, %120 : vector<8x32xf32>
    %122 = vector.extract_strided_slice %114 {offsets = [0, 96], sizes = [8, 32], strides = [1, 1]} : vector<8x128xf32> to vector<8x32xf32>
    %123 = math.tanh %121 : vector<8x32xf32>
    %124 = arith.mulf %122, %123 : vector<8x32xf32>
    %c48 = arith.constant 48 : index
    %c0_38 = arith.constant 0 : index
    %125 = vector.load %arg14[%c48, %c0_38] : memref<64x160xf32, #tpu.memory_space<vmem>>, vector<8x128xf32>
    %cst_39 = arith.constant dense<0.000000e+00> : vector<8x128xf32>
    %126 = tpu.matmul %124, %14, %cst_39 {dimension_numbers = #tpu.dot_dimension_numbers<[1], [0], [0], [1], [0, 0, 1, 1], [], []>} : vector<8x32xf32>, vector<32x128xf32>, vector<8x128xf32> -> vector<8x128xf32>
    %127 = arith.addf %125, %126 : vector<8x128xf32>
    %128 = arith.negf %127 : vector<8x128xf32>
    %129 = math.exp %128 : vector<8x128xf32>
    %cst_40 = arith.constant 1.000000e+00 : f32
    %130 = vector.broadcast %cst_40 : f32 to vector<8x128xf32>
    %131 = arith.addf %130, %129 : vector<8x128xf32>
    %132 = arith.divf %130, %131 : vector<8x128xf32>
    %133 = vector.extract_strided_slice %127 {offsets = [0, 64], sizes = [8, 32], strides = [1, 1]} : vector<8x128xf32> to vector<8x32xf32>
    %134 = math.tanh %133 : vector<8x32xf32>
    %135 = vector.extract_strided_slice %132 {offsets = [0, 32], sizes = [8, 32], strides = [1, 1]} : vector<8x128xf32> to vector<8x32xf32>
    %136 = arith.mulf %135, %121 : vector<8x32xf32>
    %137 = vector.extract_strided_slice %132 {offsets = [0, 0], sizes = [8, 32], strides = [1, 1]} : vector<8x128xf32> to vector<8x32xf32>
    %138 = arith.mulf %137, %134 : vector<8x32xf32>
    %139 = arith.addf %136, %138 : vector<8x32xf32>
    %140 = vector.extract_strided_slice %132 {offsets = [0, 96], sizes = [8, 32], strides = [1, 1]} : vector<8x128xf32> to vector<8x32xf32>
    %141 = math.tanh %139 : vector<8x32xf32>
    %142 = arith.mulf %140, %141 : vector<8x32xf32>
    %c56 = arith.constant 56 : index
    %c0_41 = arith.constant 0 : index
    %143 = vector.load %arg14[%c56, %c0_41] : memref<64x160xf32, #tpu.memory_space<vmem>>, vector<8x128xf32>
    %cst_42 = arith.constant dense<0.000000e+00> : vector<8x128xf32>
    %144 = tpu.matmul %142, %14, %cst_42 {dimension_numbers = #tpu.dot_dimension_numbers<[1], [0], [0], [1], [0, 0, 1, 1], [], []>} : vector<8x32xf32>, vector<32x128xf32>, vector<8x128xf32> -> vector<8x128xf32>
    %145 = arith.addf %143, %144 : vector<8x128xf32>
    %146 = arith.negf %145 : vector<8x128xf32>
    %147 = math.exp %146 : vector<8x128xf32>
    %cst_43 = arith.constant 1.000000e+00 : f32
    %148 = vector.broadcast %cst_43 : f32 to vector<8x128xf32>
    %149 = arith.addf %148, %147 : vector<8x128xf32>
    %150 = arith.divf %148, %149 : vector<8x128xf32>
    %151 = vector.extract_strided_slice %145 {offsets = [0, 64], sizes = [8, 32], strides = [1, 1]} : vector<8x128xf32> to vector<8x32xf32>
    %152 = math.tanh %151 : vector<8x32xf32>
    %153 = vector.extract_strided_slice %150 {offsets = [0, 32], sizes = [8, 32], strides = [1, 1]} : vector<8x128xf32> to vector<8x32xf32>
    %154 = arith.mulf %153, %139 : vector<8x32xf32>
    %155 = vector.extract_strided_slice %150 {offsets = [0, 0], sizes = [8, 32], strides = [1, 1]} : vector<8x128xf32> to vector<8x32xf32>
    %156 = arith.mulf %155, %152 : vector<8x32xf32>
    %157 = arith.addf %154, %156 : vector<8x32xf32>
    %158 = vector.extract_strided_slice %150 {offsets = [0, 96], sizes = [8, 32], strides = [1, 1]} : vector<8x128xf32> to vector<8x32xf32>
    %159 = math.tanh %157 : vector<8x32xf32>
    %160 = arith.mulf %158, %159 : vector<8x32xf32>
    %c0_44 = arith.constant 0 : index
    %c0_45 = arith.constant 0 : index
    %161 = vector.load %arg12[%c0_44, %c0_45] : memref<8x32xf32, #tpu.memory_space<vmem>>, vector<8x32xf32>
    tpu.vector_store %arg12[%c0_44, %c0_45], %160 {strides = array<i32>} : memref<8x32xf32, #tpu.memory_space<vmem>>, vector<8x32xf32>,
    %c0_46 = arith.constant 0 : index
    %c0_47 = arith.constant 0 : index
    %162 = vector.load %arg13[%c0_46, %c0_47] : memref<8x32xf32, #tpu.memory_space<vmem>>, vector<8x32xf32>
    tpu.vector_store %arg13[%c0_46, %c0_47], %157 {strides = array<i32>} : memref<8x32xf32, #tpu.memory_space<vmem>>, vector<8x32xf32>,
    %163 = tpu.concatenate %34, %52, %70, %88, %106, %124, %142, %160 in 0 : vector<8x32xf32>, vector<8x32xf32>, vector<8x32xf32>, vector<8x32xf32>, vector<8x32xf32>, vector<8x32xf32>, vector<8x32xf32>, vector<8x32xf32> -> vector<64x32xf32>
    %c0_48 = arith.constant 0 : index
    %c128 = arith.constant 128 : index
    %164 = vector.load %arg14[%c0_48, %c128] : memref<64x160xf32, #tpu.memory_space<vmem>>, vector<64x32xf32>
    %c0_49 = arith.constant 0 : index
    %c0_50 = arith.constant 0 : index
    %165 = vector.load %arg8[%c0_49, %c0_50] : memref<32x32xf32, #tpu.memory_space<vmem>>, vector<32x32xf32>
    %cst_51 = arith.constant dense<0.000000e+00> : vector<64x32xf32>
    %166 = tpu.matmul %163, %165, %cst_51 {dimension_numbers = #tpu.dot_dimension_numbers<[1], [0], [0], [1], [0, 0, 1, 1], [], []>} : vector<64x32xf32>, vector<32x32xf32>, vector<64x32xf32> -> vector<64x32xf32>
    %167 = arith.addf %164, %166 : vector<64x32xf32>
    %cst_52 = arith.constant 0.000000e+00 : f32
    %168 = vector.broadcast %cst_52 : f32 to vector<64x32xf32>
    %169 = arith.maximumf %167, %168 : vector<64x32xf32>
    %c0_53 = arith.constant 0 : index
    %c0_54 = arith.constant 0 : index
    %170 = vector.load %arg9[%c0_53, %c0_54] : memref<1x32xf32, #tpu.memory_space<vmem>>, vector<1x32xf32>
    %171 = vector.broadcast %170 : vector<1x32xf32> to vector<64x32xf32>
    %172 = arith.mulf %169, %171 : vector<64x32xf32>
    %cst_55 = arith.constant dense<0.000000e+00> : vector<64xf32>
    %173 = vector.multi_reduction <add>, %172, %cst_55 [1] : vector<64x32xf32> to vector<64xf32>
    %174 = vector.shape_cast %173 : vector<64xf32> to vector<64x1xf32>
    %c0_56 = arith.constant 0 : index
    %c0_57 = arith.constant 0 : index
    %175 = vector.load %arg10[%c0_56, %c0_57] : memref<1x1xf32, #tpu.memory_space<vmem>>, vector<1x1xf32>
    %176 = vector.broadcast %175 : vector<1x1xf32> to vector<64x1xf32>
    %177 = arith.addf %174, %176 : vector<64x1xf32>
    %c0_58 = arith.constant 0 : index
    %c0_59 = arith.constant 0 : index
    %178 = vector.load %arg11[%c0_58, %c0_59] : memref<64x1xf32, #tpu.memory_space<vmem>>, vector<64x1xf32>
    tpu.vector_store %arg11[%c0_58, %c0_59], %177 {strides = array<i32>} : memref<64x1xf32, #tpu.memory_space<vmem>>, vector<64x1xf32>,
    return
  }
}

</mosaic_0001>

<llo_original>
// kernel: critic_forward.1
$region0: #{critic_forward.1}
  #allocation0 [shape = 'u32[]', space=smem, size = 0x4, offset = 0x4, fixed_abs, tag = 'smem constant byte address 0x4 - core index']
  #allocation1 [shape = 'u32[144,128]{1,0:T(1,128)}', space=vmem, size = 0x12000, scoped, tag = 'internal scratch']
  #allocation2 [shape = 'f32[64,160]{1,0:T(8,128)}', space=vmem, size = 0x10000, scoped, tag = 'scratch operand']
  #allocation3 [shape = 'f32[1,1]{1,0:T(1,128)S(1)}', space=vmem, size = 0x200, scoped, tag = 'scoped memory for critic_forward.1']
  %s0 = inlined_call_operand.vmem [shape: f32[64,12], index: 0, kind: input, shape index: {}]
  %s1 = inlined_call_operand.vmem [shape: f32[8,32], index: 1, kind: input, shape index: {}]
  %s2 = inlined_call_operand.vmem [shape: f32[8,32], index: 2, kind: input, shape index: {}]
  %s3 = inlined_call_operand.vmem [shape: f32[12,64], index: 3, kind: input, shape index: {}]
  %s4 = inlined_call_operand.vmem [shape: f32[1,64], index: 4, kind: input, shape index: {}]
  %s5 = inlined_call_operand.vmem [shape: f32[64,160], index: 5, kind: input, shape index: {}]
  %s6 = inlined_call_operand.hbm [shape: f32[1,160], index: 6, kind: input, shape index: {}]
  %s7 = inlined_call_operand.vmem [shape: f32[32,128], index: 7, kind: input, shape index: {}]
  %s8 = inlined_call_operand.vmem [shape: f32[32,32], index: 8, kind: input, shape index: {}]
  %s9 = inlined_call_operand.hbm [shape: f32[1,32], index: 9, kind: input, shape index: {}]
  %s10 = inlined_call_operand.<no memory space> [shape: f32[1,1], index: 10, kind: input, shape index: {}]
  %s11 = inlined_call_operand.vmem [shape: f32[64,1], index: 11, kind: output, shape index: {0}]
  %s12 = inlined_call_operand.vmem [shape: f32[8,32], index: 12, kind: output, shape index: {1}]
  %s13 = inlined_call_operand.vmem [shape: f32[8,32], index: 13, kind: output, shape index: {2}]
  %14 = xla_tuple %s11, %s12, %s13
  %s15 = sld [smem:[#allocation0]]
  $region78: #{critic_forward.1} parent=0
    _
  %s17 = ssub.s32 1, %s15
  %s18 = scalar_select 0, %s17, %s15
  %v19 = vstv %s10
  %20 = vst [vmem:[#allocation3] sm:$0x1] %v19
  $region1: #{critic_forward.1} parent=0
    #allocation4 [shape = 'u8[1024]{0}', space=vmem, size = 0x400, scoped, tag = 'input window, operand 6, single buffered']
    #allocation5 [shape = 's32[1]{0}', space=sflag, size = 0x4, scoped, tag = 'scoped memory for critic_forward.1']
    #allocation6 [shape = 'u8[512]{0}', space=vmem, size = 0x400, scoped, tag = 'input window, operand 9, single buffered']
    #allocation7 [shape = 's32[1]{0}', space=sflag, size = 0x4, scoped, tag = 'scoped memory for critic_forward.1']
    %21 = vsyncpa [#allocation5], 0
    %22 = vsyncpa [#allocation7], 0
    // Predicated region
    $region2: #{critic_forward.1} parent=1 // pred_check
      _
    $region3: #{critic_forward.1} parent=1 // pred_check_branch
      %24 = sbr.rel (0) target = $region5
    $region4: #{critic_forward.1} parent=1 // pred_region
      _
    $region5: #{critic_forward.1} parent=1 // pred_fallthru
      _
    // Predicated region
    $region6: #{critic_forward.1} parent=1 // pred_check
      _
    $region7: #{critic_forward.1} parent=1 // pred_check_branch
      %26 = sbr.rel (0) target = $region9
    $region8: #{critic_forward.1} parent=1 // pred_region
      _
    $region9: #{critic_forward.1} parent=1 // pred_fallthru
      _
    // Predicated region
    $region10: #{critic_forward.1} parent=1 // pred_check
      _
    $region11: #{critic_forward.1} parent=1 // pred_check_branch
      %28 = sbr.rel (0) target = $region13
    $region12: #{critic_forward.1} parent=1 // pred_region
      _
    $region13: #{critic_forward.1} parent=1 // pred_fallthru
      _
    // Predicated region
    $region14: #{critic_forward.1} parent=1 // pred_check
      _
    $region15: #{critic_forward.1} parent=1 // pred_check_branch
      %30 = sbr.rel (0) target = $region17
    $region16: #{critic_forward.1} parent=1 // pred_region
      _
    $region17: #{critic_forward.1} parent=1 // pred_fallthru
      _
    // Predicated region
    $region18: #{critic_forward.1} parent=1 // pred_check
      _
    $region19: #{critic_forward.1} parent=1 // pred_check_branch
      %32 = sbr.rel (0) target = $region21
    $region20: #{critic_forward.1} parent=1 // pred_region
      _
    $region21: #{critic_forward.1} parent=1 // pred_fallthru
      _
    // Predicated region
    $region22: #{critic_forward.1} parent=1 // pred_check
      _
    $region23: #{critic_forward.1} parent=1 // pred_check_branch
      %34 = sbr.rel (0) target = $region25
    $region24: #{critic_forward.1} parent=1 // pred_region
      _
    $region25: #{critic_forward.1} parent=1 // pred_fallthru
      _
    // Predicated region
    $region26: #{critic_forward.1} parent=1 // pred_check
      _
    $region27: #{critic_forward.1} parent=1 // pred_check_branch
      %36 = sbr.rel (0) target = $region29
    $region28: #{critic_forward.1} parent=1 // pred_region
      %s38 = ssub.s32 32, 32
      %39 = vsyncadd [#allocation5], %s38
      %s41 = sshll.u32 [#allocation4], 4
      %s42 = int_to_ptr.vmem [resolvable:$true] %s41
      %44 = dma.hbm_to_vmem [thread:$0]  %s6, 32, %s42, [#allocation5]
    $region29: #{critic_forward.1} parent=1 // pred_fallthru
      _
    // Predicated region
    $region30: #{critic_forward.1} parent=1 // pred_check
      _
    $region31: #{critic_forward.1} parent=1 // pred_check_branch
      %46 = sbr.rel (0) target = $region33
    $region32: #{critic_forward.1} parent=1 // pred_region
      _
    $region33: #{critic_forward.1} parent=1 // pred_fallthru
      _
    // Predicated region
    $region34: #{critic_forward.1} parent=1 // pred_check
      _
    $region35: #{critic_forward.1} parent=1 // pred_check_branch
      %48 = sbr.rel (0) target = $region37
    $region36: #{critic_forward.1} parent=1 // pred_region
      _
    $region37: #{critic_forward.1} parent=1 // pred_fallthru
      _
    // Predicated region
    $region38: #{critic_forward.1} parent=1 // pred_check
      _
    $region39: #{critic_forward.1} parent=1 // pred_check_branch
      %50 = sbr.rel (0) target = $region41
    $region40: #{critic_forward.1} parent=1 // pred_region
      %s52 = ssub.s32 16, 16
      %53 = vsyncadd [#allocation7], %s52
      %s55 = sshll.u32 [#allocation6], 4
      %s56 = int_to_ptr.vmem [resolvable:$true] %s55
      %58 = dma.hbm_to_vmem [thread:$0]  %s9, 16, %s56, [#allocation7]
    $region41: #{critic_forward.1} parent=1 // pred_fallthru
      _
    // Predicated region
    $region42: #{critic_forward.1} parent=1 // pred_check
      _
    $region43: #{critic_forward.1} parent=1 // pred_check_branch
      %60 = sbr.rel (0) target = $region45
    $region44: #{critic_forward.1} parent=1 // pred_region
      _
    $region45: #{critic_forward.1} parent=1 // pred_fallthru
      _
    // Predicated region
    $region46: #{critic_forward.1} parent=1 // pred_check
      _
    $region47: #{critic_forward.1} parent=1 // pred_check_branch
      %62 = sbr.rel (0) target = $region49
    $region48: #{critic_forward.1} parent=1 // pred_region
      %63 = dma.done [#allocation5], 32
    $region49: #{critic_forward.1} parent=1 // pred_fallthru
      _
    // Predicated region
    $region50: #{critic_forward.1} parent=1 // pred_check
      _
    $region51: #{critic_forward.1} parent=1 // pred_check_branch
      %65 = sbr.rel (0) target = $region53
    $region52: #{critic_forward.1} parent=1 // pred_region
      %66 = dma.done [#allocation7], 16
    $region53: #{critic_forward.1} parent=1 // pred_fallthru
      _
    %v67 = vld [vmem:[%s0] sm:$0xff]
    %v68 = vld [vmem:[%s0 + $0x8] sm:$0xff]
    %v69 = vld [vmem:[%s0 + $0x10] sm:$0xff]
    %v70 = vld [vmem:[%s0 + $0x18] sm:$0xff]
    %v71 = vld [vmem:[%s0 + $0x20] sm:$0xff]
    %v72 = vld [vmem:[%s0 + $0x28] sm:$0xff]
    %v73 = vld [vmem:[%s0 + $0x30] sm:$0xff]
    %v74 = vld [vmem:[%s0 + $0x38] sm:$0xff]
    %v75 = vld [vmem:[%s3] sm:$0xff]
    %v76 = vld [vmem:[%s3 + $0x8] sm:$0xf]
    %v77 = vld [vmem:[%s4] sm:$0x1]
    %v79 = vlaneseq
    %v80 = vshrl.u32 %v79, 7
    %v81 = vsub.s32 0, %v80
    %v82 = vrot.slane %v77, %v81
    %vm84 = vcmask 97280
    %v86 = vsel %vm84, %v67, 0
    %v89 = vsel %vm84, %v68, 0
    %v92 = vsel %vm84, %v69, 0
    %v95 = vsel %vm84, %v70, 0
    %v98 = vsel %vm84, %v71, 0
    %v101 = vsel %vm84, %v72, 0
    %v104 = vsel %vm84, %v73, 0
    %v107 = vsel %vm84, %v74, 0
    %vm109 = vcmask 1043456
    %v111 = vsel %vm109, %v76, 0
    %113 = vmatprep.subr.mxu0 0.0
    %114 = vmatpush1.msra.mxu0 %v75
    %115 = vmatprep.subr.mxu0 0.0
    %116 = vmatpush1.msra.mxu0 %v111
    %117 = vmatprep.subr.mxu0 0.0
    %118 = vmatpush1.msra.mxu0 0.0
    %119 = vmatprep.subr.mxu0 0.0
    %120 = vmatpush1.msra.mxu0 0.0
    %121 = vmatprep.subr.mxu0 0.0
    %122 = vmatpush1.msra.mxu0 0.0
    %123 = vmatprep.subr.mxu0 0.0
    %124 = vmatpush1.msra.mxu0 0.0
    %125 = vmatprep.subr.mxu0 0.0
    %126 = vmatpush1.msra.mxu0 0.0
    %127 = vmatprep.subr.mxu0 0.0
    %128 = vmatpush1.msra.mxu0 0.0
    %129 = vmatprep.subr.mxu0 0.0
    %130 = vmatpush1.msra.mxu0 0.0
    %131 = vmatprep.subr.mxu0 0.0
    %132 = vmatpush1.msra.mxu0 0.0
    %133 = vmatprep.subr.mxu0 0.0
    %134 = vmatpush1.msra.mxu0 0.0
    %135 = vmatprep.subr.mxu0 0.0
    %136 = vmatpush1.msra.mxu0 0.0
    %137 = vmatprep.subr.mxu0 0.0
    %138 = vmatpush1.msra.mxu0 0.0
    %139 = vmatprep.subr.mxu0 0.0
    %140 = vmatpush1.msra.mxu0 0.0
    %141 = vmatprep.subr.mxu0 0.0
    %142 = vmatpush1.msra.mxu0 0.0
    %143 = vmatprep.subr.mxu0 0.0
    %144 = vmatpush1.msra.mxu0 0.0
    %145 = vmatprep.subr.mxu0 0.0
    %146 = vmatpush1.msra.mxu0 0.0
    %147 = vmatprep.subr.mxu0 0.0
    %148 = vmatpush1.msra.mxu0 0.0
    %149 = vmatprep.subr.mxu0 0.0
    %150 = vmatpush1.msra.mxu0 0.0
    %151 = vmatprep.subr.mxu0 0.0
    %152 = vmatpush1.msra.mxu0 0.0
    %153 = vmatprep.subr.mxu0 0.0
    %154 = vmatpush1.msra.mxu0 0.0
    %155 = vmatprep.subr.mxu0 0.0
    %156 = vmatpush1.msra.mxu0 0.0
    %157 = vmatprep.subr.mxu0 0.0
    %158 = vmatpush1.msra.mxu0 0.0
    %159 = vmatprep.subr.mxu0 0.0
    %160 = vmatpush1.msra.mxu0 0.0
    %161 = vmatprep.subr.mxu0 0.0
    %162 = vmatpush1.msra.mxu0 0.0
    %163 = vmatprep.subr.mxu0 0.0
    %164 = vmatpush1.msra.mxu0 0.0
    %165 = vmatprep.subr.mxu0 0.0
    %166 = vmatpush1.msra.mxu0 0.0
    %167 = vmatprep.subr.mxu0 0.0
    %168 = vmatpush1.msra.mxu0 0.0
    %169 = vmatprep.subr.mxu0 0.0
    %170 = vmatpush1.msra.mxu0 0.0
    %171 = vmatprep.subr.mxu0 0.0
    %172 = vmatpush1.msra.mxu0 0.0
    %173 = vmatprep.subr.mxu0 0.0
    %174 = vmatpush1.msra.mxu0 0.0
    %175 = vmatprep.subr.mxu0 0.0
    %176 = vmatpush1.msra.mxu0 0.0
    %177 = vmatprep.mubr.f32.mxu0 0.0
    %178 = vmatmul.mubr.f32.gmra.mrb[0].mxu0 %v86
    %v179 = vpop.f32.mrb[0].mxu0
    %v180 = vadd.f32 %v82, %v179
    %v181 = vpop.f32.mrb[0].mxu0
    %182 = vmatprep.mubr.f32.mxu0 0.0
    %183 = vmatmul.mubr.f32.gmra.mrb[0].mxu0 %v89
    %v184 = vpop.f32.mrb[0].mxu0
    %v185 = vadd.f32 %v82, %v184
    %v186 = vpop.f32.mrb[0].mxu0
    %187 = vmatprep.mubr.f32.mxu0 0.0
    %188 = vmatmul.mubr.f32.gmra.mrb[0].mxu0 %v92
    %v189 = vpop.f32.mrb[0].mxu0
    %v190 = vadd.f32 %v82, %v189
    %v191 = vpop.f32.mrb[0].mxu0
    %192 = vmatprep.mubr.f32.mxu0 0.0
    %193 = vmatmul.mubr.f32.gmra.mrb[0].mxu0 %v95
    %v194 = vpop.f32.mrb[0].mxu0
    %v195 = vadd.f32 %v82, %v194
    %v196 = vpop.f32.mrb[0].mxu0
    %197 = vmatprep.mubr.f32.mxu0 0.0
    %198 = vmatmul.mubr.f32.gmra.mrb[0].mxu0 %v98
    %v199 = vpop.f32.mrb[0].mxu0
    %v200 = vadd.f32 %v82, %v199
    %v201 = vpop.f32.mrb[0].mxu0
    %202 = vmatprep.mubr.f32.mxu0 0.0
    %203 = vmatmul.mubr.f32.gmra.mrb[0].mxu0 %v101
    %v204 = vpop.f32.mrb[0].mxu0
    %v205 = vadd.f32 %v82, %v204
    %v206 = vpop.f32.mrb[0].mxu0
    %207 = vmatprep.mubr.f32.mxu0 0.0
    %208 = vmatmul.mubr.f32.gmra.mrb[0].mxu0 %v104
    %v209 = vpop.f32.mrb[0].mxu0
    %v210 = vadd.f32 %v82, %v209
    %v211 = vpop.f32.mrb[0].mxu0
    %212 = vmatprep.mubr.f32.mxu0 0.0
    %213 = vmatmul.mubr.f32.gmra.mrb[0].mxu0 %v107
    %v214 = vpop.f32.mrb[0].mxu0
    %v215 = vadd.f32 %v82, %v214
    %v216 = vpop.f32.mrb[0].mxu0
    %217 = vdwg.mxu0
    %v218 = vmax.f32 %v180, 0.0
    %v219 = vmax.f32 %v185, 0.0
    %v220 = vmax.f32 %v190, 0.0
    %v221 = vmax.f32 %v195, 0.0
    %v222 = vmax.f32 %v200, 0.0
    %v223 = vmax.f32 %v205, 0.0
    %v224 = vmax.f32 %v210, 0.0
    %v225 = vmax.f32 %v215, 0.0
    %v226 = vld [vmem:[%s5] sm:$0xff]
    %v227 = vld [vmem:[%s5 + $0x8] sm:$0xff]
    %v228 = vld [vmem:[%s5 + $0x10] sm:$0xff]
    %v229 = vld [vmem:[%s5 + $0x18] sm:$0xff]
    %v230 = vld [vmem:[%s5 + $0x20] sm:$0xff]
    %v231 = vld [vmem:[%s5 + $0x28] sm:$0xff]
    %v232 = vld [vmem:[%s5 + $0x30] sm:$0xff]
    %v233 = vld [vmem:[%s5 + $0x38] sm:$0xff]
    %v234 = vld [vmem:[%s5 + $0x40] sm:$0xff]
    %v235 = vld [vmem:[%s5 + $0x48] sm:$0xff]
    %v236 = vld [vmem:[%s5 + $0x50] sm:$0xff]
    %v237 = vld [vmem:[%s5 + $0x58] sm:$0xff]
    %v238 = vld [vmem:[%s5 + $0x60] sm:$0xff]
    %v239 = vld [vmem:[%s5 + $0x68] sm:$0xff]
    %v240 = vld [vmem:[%s5 + $0x70] sm:$0xff]
    %v241 = vld [vmem:[%s5 + $0x78] sm:$0xff]
    %v242 = vld [vmem:[#allocation4] sm:$0x3]
    %v244 = vlaneseq
    %v245 = vshrl.u32 %v244, 7
    %v246 = vsub.s32 0, %v245
    %v247 = vrot.slane %v242, %v246
    %v248 = vlaneseq
    %v249 = vshrl.u32 %v248, 7
    %v250 = vsub.s32 1, %v249
    %v251 = vrot.slane %v242, %v250
    %vm254 = vcmask 523264
    %v256 = vsel %vm254, %v218, 0
    %v259 = vsel %vm254, %v219, 0
    %v262 = vsel %vm254, %v220, 0
    %v265 = vsel %vm254, %v221, 0
    %v268 = vsel %vm254, %v222, 0
    %v271 = vsel %vm254, %v223, 0
    %v274 = vsel %vm254, %v224, 0
    %v277 = vsel %vm254, %v225, 0
    %279 = vmatprep.subr.mxu0 %v227
    %280 = vmatpush1.msra.mxu0 %v226
    %281 = vmatprep.subr.mxu0 %v229
    %282 = vmatpush1.msra.mxu0 %v228
    %283 = vmatprep.subr.mxu0 %v231
    %284 = vmatpush1.msra.mxu0 %v230
    %285 = vmatprep.subr.mxu0 %v233
    %286 = vmatpush1.msra.mxu0 %v232
    %287 = vmatprep.subr.mxu0 %v235
    %288 = vmatpush1.msra.mxu0 %v234
    %289 = vmatprep.subr.mxu0 %v237
    %290 = vmatpush1.msra.mxu0 %v236
    %291 = vmatprep.subr.mxu0 %v239
    %292 = vmatpush1.msra.mxu0 %v238
    %293 = vmatprep.subr.mxu0 %v241
    %294 = vmatpush1.msra.mxu0 %v240
    %295 = vmatprep.subr.mxu0 0.0
    %296 = vmatpush1.msra.mxu0 0.0
    %297 = vmatprep.subr.mxu0 0.0
    %298 = vmatpush1.msra.mxu0 0.0
    %299 = vmatprep.subr.mxu0 0.0
    %300 = vmatpush1.msra.mxu0 0.0
    %301 = vmatprep.subr.mxu0 0.0
    %302 = vmatpush1.msra.mxu0 0.0
    %303 = vmatprep.subr.mxu0 0.0
    %304 = vmatpush1.msra.mxu0 0.0
    %305 = vmatprep.subr.mxu0 0.0
    %306 = vmatpush1.msra.mxu0 0.0
    %307 = vmatprep.subr.mxu0 0.0
    %308 = vmatpush1.msra.mxu0 0.0
    %309 = vmatprep.subr.mxu0 0.0
    %310 = vmatpush1.msra.mxu0 0.0
    %311 = vmatprep.subr.mxu0 0.0
    %312 = vmatpush1.msra.mxu0 0.0
    %313 = vmatprep.subr.mxu0 0.0
    %314 = vmatpush1.msra.mxu0 0.0
    %315 = vmatprep.subr.mxu0 0.0
    %316 = vmatpush1.msra.mxu0 0.0
    %317 = vmatprep.subr.mxu0 0.0
    %318 = vmatpush1.msra.mxu0 0.0
    %319 = vmatprep.subr.mxu0 0.0
    %320 = vmatpush1.msra.mxu0 0.0
    %321 = vmatprep.subr.mxu0 0.0
    %322 = vmatpush1.msra.mxu0 0.0
    %323 = vmatprep.subr.mxu0 0.0
    %324 = vmatpush1.msra.mxu0 0.0
    %325 = vmatprep.subr.mxu0 0.0
    %326 = vmatpush1.msra.mxu0 0.0
    %327 = vmatprep.subr.mxu0 0.0
    %328 = vmatpush1.msra.mxu0 0.0
    %329 = vmatprep.subr.mxu0 0.0
    %330 = vmatpush1.msra.mxu0 0.0
    %331 = vmatprep.subr.mxu0 0.0
    %332 = vmatpush1.msra.mxu0 0.0
    %333 = vmatprep.subr.mxu0 0.0
    %334 = vmatpush1.msra.mxu0 0.0
    %335 = vmatprep.subr.mxu0 0.0
    %336 = vmatpush1.msra.mxu0 0.0
    %337 = vmatprep.subr.mxu0 0.0
    %338 = vmatpush1.msra.mxu0 0.0
    %339 = vmatprep.subr.mxu0 0.0
    %340 = vmatpush1.msra.mxu0 0.0
    %341 = vmatprep.subr.mxu0 0.0
    %342 = vmatpush1.msra.mxu0 0.0
    %343 = vmatprep.mubr.f32.mxu0 0.0
    %344 = vmatmul.mubr.f32.gmra.mrb[0].mxu0 %v256
    %v345 = vpop.f32.mrb[0].mxu0
    %v346 = vadd.f32 %v247, %v345
    %v347 = vpop.f32.mrb[0].mxu0
    %v348 = vadd.f32 %v251, %v347
    %349 = vmatprep.mubr.f32.mxu0 0.0
    %350 = vmatmul.mubr.f32.gmra.mrb[0].mxu0 %v259
    %v351 = vpop.f32.mrb[0].mxu0
    %v352 = vadd.f32 %v247, %v351
    %v353 = vpop.f32.mrb[0].mxu0
    %v354 = vadd.f32 %v251, %v353
    %355 = vmatprep.mubr.f32.mxu0 0.0
    %356 = vmatmul.mubr.f32.gmra.mrb[0].mxu0 %v262
    %v357 = vpop.f32.mrb[0].mxu0
    %v358 = vadd.f32 %v247, %v357
    %v359 = vpop.f32.mrb[0].mxu0
    %v360 = vadd.f32 %v251, %v359
    %361 = vmatprep.mubr.f32.mxu0 0.0
    %362 = vmatmul.mubr.f32.gmra.mrb[0].mxu0 %v265
    %v363 = vpop.f32.mrb[0].mxu0
    %v364 = vadd.f32 %v247, %v363
    %v365 = vpop.f32.mrb[0].mxu0
    %v366 = vadd.f32 %v251, %v365
    %367 = vmatprep.mubr.f32.mxu0 0.0
    %368 = vmatmul.mubr.f32.gmra.mrb[0].mxu0 %v268
    %v369 = vpop.f32.mrb[0].mxu0
    %v370 = vadd.f32 %v247, %v369
    %v371 = vpop.f32.mrb[0].mxu0
    %v372 = vadd.f32 %v251, %v371
    %373 = vmatprep.mubr.f32.mxu0 0.0
    %374 = vmatmul.mubr.f32.gmra.mrb[0].mxu0 %v271
    %v375 = vpop.f32.mrb[0].mxu0
    %v376 = vadd.f32 %v247, %v375
    %v377 = vpop.f32.mrb[0].mxu0
    %v378 = vadd.f32 %v251, %v377
    %379 = vmatprep.mubr.f32.mxu0 0.0
    %380 = vmatmul.mubr.f32.gmra.mrb[0].mxu0 %v274
    %v381 = vpop.f32.mrb[0].mxu0
    %v382 = vadd.f32 %v247, %v381
    %v383 = vpop.f32.mrb[0].mxu0
    %v384 = vadd.f32 %v251, %v383
    %385 = vmatprep.mubr.f32.mxu0 0.0
    %386 = vmatmul.mubr.f32.gmra.mrb[0].mxu0 %v277
    %v387 = vpop.f32.mrb[0].mxu0
    %v388 = vadd.f32 %v247, %v387
    %v389 = vpop.f32.mrb[0].mxu0
    %v390 = vadd.f32 %v251, %v389
    %391 = vdwg.mxu0
    %392 = vst [vmem:[#allocation2] sm:$0xff] %v346
    %vm393 = vcmask 261120
    %394 = vst.msk [vmem:[#allocation2 + $0x8] sm:$0xff] %vm393, %v348
    %395 = vst [vmem:[#allocation2 + $0x10] sm:$0xff] %v352
    %396 = vst.msk [vmem:[#allocation2 + $0x18] sm:$0xff] %vm393, %v354
    %397 = vst [vmem:[#allocation2 + $0x20] sm:$0xff] %v358
    %398 = vst.msk [vmem:[#allocation2 + $0x28] sm:$0xff] %vm393, %v360
    %399 = vst [vmem:[#allocation2 + $0x30] sm:$0xff] %v364
    %400 = vst.msk [vmem:[#allocation2 + $0x38] sm:$0xff] %vm393, %v366
    %401 = vst [vmem:[#allocation2 + $0x40] sm:$0xff] %v370
    %402 = vst.msk [vmem:[#allocation2 + $0x48] sm:$0xff] %vm393, %v372
    %403 = vst [vmem:[#allocation2 + $0x50] sm:$0xff] %v376
    %404 = vst.msk [vmem:[#allocation2 + $0x58] sm:$0xff] %vm393, %v378
    %405 = vst [vmem:[#allocation2 + $0x60] sm:$0xff] %v382
    %406 = vst.msk [vmem:[#allocation2 + $0x68] sm:$0xff] %vm393, %v384
    %407 = vst [vmem:[#allocation2 + $0x70] sm:$0xff] %v388
    %408 = vst.msk [vmem:[#allocation2 + $0x78] sm:$0xff] %vm393, %v390
    %v409 = vld [vmem:[%s7] sm:$0xff]
    %v410 = vld [vmem:[%s7 + $0x8] sm:$0xff]
    %v411 = vld [vmem:[%s7 + $0x10] sm:$0xff]
    %v412 = vld [vmem:[%s7 + $0x18] sm:$0xff]
    %v413 = vld [vmem:[%s1] sm:$0xff]
    %v414 = vld [vmem:[%s2] sm:$0xff]
    %v415 = vld [vmem:[#allocation2] sm:$0xff]
    %v417 = vsel %vm393, %v413, 0
    %419 = vmatprep.subr.mxu0 0.0
    %420 = vmatpush1.msra.mxu0 %v409
    %421 = vmatprep.subr.mxu0 0.0
    %422 = vmatpush1.msra.mxu0 %v410
    %423 = vmatprep.subr.mxu0 0.0
    %424 = vmatpush1.msra.mxu0 %v411
    %425 = vmatprep.subr.mxu0 0.0
    %426 = vmatpush1.msra.mxu0 %v412
    %427 = vmatprep.subr.mxu0 0.0
    %428 = vmatpush1.msra.mxu0 0.0
    %429 = vmatprep.subr.mxu0 0.0
    %430 = vmatpush1.msra.mxu0 0.0
    %431 = vmatprep.subr.mxu0 0.0
    %432 = vmatpush1.msra.mxu0 0.0
    %433 = vmatprep.subr.mxu0 0.0
    %434 = vmatpush1.msra.mxu0 0.0
    %435 = vmatprep.subr.mxu0 0.0
    %436 = vmatpush1.msra.mxu0 0.0
    %437 = vmatprep.subr.mxu0 0.0
    %438 = vmatpush1.msra.mxu0 0.0
    %439 = vmatprep.subr.mxu0 0.0
    %440 = vmatpush1.msra.mxu0 0.0
    %441 = vmatprep.subr.mxu0 0.0
    %442 = vmatpush1.msra.mxu0 0.0
    %443 = vmatprep.subr.mxu0 0.0
    %444 = vmatpush1.msra.mxu0 0.0
    %445 = vmatprep.subr.mxu0 0.0
    %446 = vmatpush1.msra.mxu0 0.0
    %447 = vmatprep.subr.mxu0 0.0
    %448 = vmatpush1.msra.mxu0 0.0
    %449 = vmatprep.subr.mxu0 0.0
    %450 = vmatpush1.msra.mxu0 0.0
    %451 = vmatprep.subr.mxu0 0.0
    %452 = vmatpush1.msra.mxu0 0.0
    %453 = vmatprep.subr.mxu0 0.0
    %454 = vmatpush1.msra.mxu0 0.0
    %455 = vmatprep.subr.mxu0 0.0
    %456 = vmatpush1.msra.mxu0 0.0
    %457 = vmatprep.subr.mxu0 0.0
    %458 = vmatpush1.msra.mxu0 0.0
    %459 = vmatprep.subr.mxu0 0.0
    %460 = vmatpush1.msra.mxu0 0.0
    %461 = vmatprep.subr.mxu0 0.0
    %462 = vmatpush1.msra.mxu0 0.0
    %463 = vmatprep.subr.mxu0 0.0
    %464 = vmatpush1.msra.mxu0 0.0
    %465 = vmatprep.subr.mxu0 0.0
    %466 = vmatpush1.msra.mxu0 0.0
    %467 = vmatprep.subr.mxu0 0.0
    %468 = vmatpush1.msra.mxu0 0.0
    %469 = vmatprep.subr.mxu0 0.0
    %470 = vmatpush1.msra.mxu0 0.0
    %471 = vmatprep.subr.mxu0 0.0
    %472 = vmatpush1.msra.mxu0 0.0
    %473 = vmatprep.subr.mxu0 0.0
    %474 = vmatpush1.msra.mxu0 0.0
    %475 = vmatprep.subr.mxu0 0.0
    %476 = vmatpush1.msra.mxu0 0.0
    %477 = vmatprep.subr.mxu0 0.0
    %478 = vmatpush1.msra.mxu0 0.0
    %479 = vmatprep.subr.mxu0 0.0
    %480 = vmatpush1.msra.mxu0 0.0
    %481 = vmatprep.subr.mxu0 0.0
    %482 = vmatpush1.msra.mxu0 0.0
    %483 = vmatprep.mubr.f32.mxu0 0.0
    %484 = vmatmul.mubr.f32.gmra.mrb[0].mxu0 %v417
    %v485 = vpop.f32.mrb[0].mxu0
    %v486 = vadd.f32 0.0, %v485
    %v487 = vpop.f32.mrb[0].mxu0
    %488 = vdwg.mxu0
    %v489 = vadd.f32 %v415, %v486
    %v490 = vxor.u32 %v489, 2147483648
    %v491 = vmul.f32 %v490, 1.442695
    %v492 = vpow.pop %v491
    %v493 = vadd.f32 %v492, 1.0
    %v494 = vrcp.pop %v493
    %v495 = vmul.f32 1.0, %v494
    %v496 = vtanh.pop %v489
    %498 = vrot.lane.b32.xlu0 %v414, 32
    %v499 = vpop.permute.xlu0 %498
    %v501 = vmul.f32 %v495, %v499
    %503 = vrot.lane.b32.xlu0 %v496, 64
    %v504 = vpop.permute.xlu0 %503
    %v506 = vmul.f32 %v495, %v504
    %508 = vrot.lane.b32.xlu0 %v506, 32
    %v509 = vpop.permute.xlu0 %508
    %v511 = vadd.f32 %v501, %v509
    %v512 = vtanh.pop %v511
    %514 = vrot.lane.b32.xlu0 %v512, 64
    %v515 = vpop.permute.xlu0 %514
    %v517 = vmul.f32 %v495, %v515
    %v518 = vld [vmem:[#allocation2 + $0x10] sm:$0xff]
    %520 = vrot.lane.b32.xlu0 %v517, 32
    %v521 = vpop.permute.xlu0 %520
    %v522 = vsel %vm393, %v521, 0
    %524 = vmatprep.subr.mxu0 0.0
    %525 = vmatpush1.msra.mxu0 %v409
    %526 = vmatprep.subr.mxu0 0.0
    %527 = vmatpush1.msra.mxu0 %v410
    %528 = vmatprep.subr.mxu0 0.0
    %529 = vmatpush1.msra.mxu0 %v411
    %530 = vmatprep.subr.mxu0 0.0
    %531 = vmatpush1.msra.mxu0 %v412
    %532 = vmatprep.subr.mxu0 0.0
    %533 = vmatpush1.msra.mxu0 0.0
    %534 = vmatprep.subr.mxu0 0.0
    %535 = vmatpush1.msra.mxu0 0.0
    %536 = vmatprep.subr.mxu0 0.0
    %537 = vmatpush1.msra.mxu0 0.0
    %538 = vmatprep.subr.mxu0 0.0
    %539 = vmatpush1.msra.mxu0 0.0
    %540 = vmatprep.subr.mxu0 0.0
    %541 = vmatpush1.msra.mxu0 0.0
    %542 = vmatprep.subr.mxu0 0.0
    %543 = vmatpush1.msra.mxu0 0.0
    %544 = vmatprep.subr.mxu0 0.0
    %545 = vmatpush1.msra.mxu0 0.0
    %546 = vmatprep.subr.mxu0 0.0
    %547 = vmatpush1.msra.mxu0 0.0
    %548 = vmatprep.subr.mxu0 0.0
    %549 = vmatpush1.msra.mxu0 0.0
    %550 = vmatprep.subr.mxu0 0.0
    %551 = vmatpush1.msra.mxu0 0.0
    %552 = vmatprep.subr.mxu0 0.0
    %553 = vmatpush1.msra.mxu0 0.0
    %554 = vmatprep.subr.mxu0 0.0
    %555 = vmatpush1.msra.mxu0 0.0
    %556 = vmatprep.subr.mxu0 0.0
    %557 = vmatpush1.msra.mxu0 0.0
    %558 = vmatprep.subr.mxu0 0.0
    %559 = vmatpush1.msra.mxu0 0.0
    %560 = vmatprep.subr.mxu0 0.0
    %561 = vmatpush1.msra.mxu0 0.0
    %562 = vmatprep.subr.mxu0 0.0
    %563 = vmatpush1.msra.mxu0 0.0
    %564 = vmatprep.subr.mxu0 0.0
    %565 = vmatpush1.msra.mxu0 0.0
    %566 = vmatprep.subr.mxu0 0.0
    %567 = vmatpush1.msra.mxu0 0.0
    %568 = vmatprep.subr.mxu0 0.0
    %569 = vmatpush1.msra.mxu0 0.0
    %570 = vmatprep.subr.mxu0 0.0
    %571 = vmatpush1.msra.mxu0 0.0
    %572 = vmatprep.subr.mxu0 0.0
    %573 = vmatpush1.msra.mxu0 0.0
    %574 = vmatprep.subr.mxu0 0.0
    %575 = vmatpush1.msra.mxu0 0.0
    %576 = vmatprep.subr.mxu0 0.0
    %577 = vmatpush1.msra.mxu0 0.0
    %578 = vmatprep.subr.mxu0 0.0
    %579 = vmatpush1.msra.mxu0 0.0
    %580 = vmatprep.subr.mxu0 0.0
    %581 = vmatpush1.msra.mxu0 0.0
    %582 = vmatprep.subr.mxu0 0.0
    %583 = vmatpush1.msra.mxu0 0.0
    %584 = vmatprep.subr.mxu0 0.0
    %585 = vmatpush1.msra.mxu0 0.0
    %586 = vmatprep.subr.mxu0 0.0
    %587 = vmatpush1.msra.mxu0 0.0
    %588 = vmatprep.mubr.f32.mxu0 0.0
    %589 = vmatmul.mubr.f32.gmra.mrb[0].mxu0 %v522
    %v590 = vpop.f32.mrb[0].mxu0
    %v591 = vadd.f32 0.0, %v590
    %v592 = vpop.f32.mrb[0].mxu0
    %593 = vdwg.mxu0
    %v594 = vadd.f32 %v518, %v591
    %v595 = vxor.u32 %v594, 2147483648
    %v596 = vmul.f32 %v595, 1.442695
    %v597 = vpow.pop %v596
    %v598 = vadd.f32 %v597, 1.0
    %v599 = vrcp.pop %v598
    %v600 = vmul.f32 1.0, %v599
    %v601 = vtanh.pop %v594
    %v602 = vmul.f32 %v600, %v511
    %604 = vrot.lane.b32.xlu0 %v601, 64
    %v605 = vpop.permute.xlu0 %604
    %v607 = vmul.f32 %v600, %v605
    %609 = vrot.lane.b32.xlu0 %v607, 32
    %v610 = vpop.permute.xlu0 %609
    %v612 = vadd.f32 %v602, %v610
    %v613 = vtanh.pop %v612
    %615 = vrot.lane.b32.xlu0 %v613, 64
    %v616 = vpop.permute.xlu0 %615
    %v618 = vmul.f32 %v600, %v616
    %v619 = vld [vmem:[#allocation2 + $0x20] sm:$0xff]
    %621 = vrot.lane.b32.xlu0 %v618, 32
    %v622 = vpop.permute.xlu0 %621
    %v623 = vsel %vm393, %v622, 0
    %625 = vmatprep.subr.mxu0 0.0
    %626 = vmatpush1.msra.mxu0 %v409
    %627 = vmatprep.subr.mxu0 0.0
    %628 = vmatpush1.msra.mxu0 %v410
    %629 = vmatprep.subr.mxu0 0.0
    %630 = vmatpush1.msra.mxu0 %v411
    %631 = vmatprep.subr.mxu0 0.0
    %632 = vmatpush1.msra.mxu0 %v412
    %633 = vmatprep.subr.mxu0 0.0
    %634 = vmatpush1.msra.mxu0 0.0
    %635 = vmatprep.subr.mxu0 0.0
    %636 = vmatpush1.msra.mxu0 0.0
    %637 = vmatprep.subr.mxu0 0.0
    %638 = vmatpush1.msra.mxu0 0.0
    %639 = vmatprep.subr.mxu0 0.0
    %640 = vmatpush1.msra.mxu0 0.0
    %641 = vmatprep.subr.mxu0 0.0
    %642 = vmatpush1.msra.mxu0 0.0
    %643 = vmatprep.subr.mxu0 0.0
    %644 = vmatpush1.msra.mxu0 0.0
    %645 = vmatprep.subr.mxu0 0.0
    %646 = vmatpush1.msra.mxu0 0.0
    %647 = vmatprep.subr.mxu0 0.0
    %648 = vmatpush1.msra.mxu0 0.0
    %649 = vmatprep.subr.mxu0 0.0
    %650 = vmatpush1.msra.mxu0 0.0
    %651 = vmatprep.subr.mxu0 0.0
    %652 = vmatpush1.msra.mxu0 0.0
    %653 = vmatprep.subr.mxu0 0.0
    %654 = vmatpush1.msra.mxu0 0.0
    %655 = vmatprep.subr.mxu0 0.0
    %656 = vmatpush1.msra.mxu0 0.0
    %657 = vmatprep.subr.mxu0 0.0
    %658 = vmatpush1.msra.mxu0 0.0
    %659 = vmatprep.subr.mxu0 0.0
    %660 = vmatpush1.msra.mxu0 0.0
    %661 = vmatprep.subr.mxu0 0.0
    %662 = vmatpush1.msra.mxu0 0.0
    %663 = vmatprep.subr.mxu0 0.0
    %664 = vmatpush1.msra.mxu0 0.0
    %665 = vmatprep.subr.mxu0 0.0
    %666 = vmatpush1.msra.mxu0 0.0
    %667 = vmatprep.subr.mxu0 0.0
    %668 = vmatpush1.msra.mxu0 0.0
    %669 = vmatprep.subr.mxu0 0.0
    %670 = vmatpush1.msra.mxu0 0.0
    %671 = vmatprep.subr.mxu0 0.0
    %672 = vmatpush1.msra.mxu0 0.0
    %673 = vmatprep.subr.mxu0 0.0
    %674 = vmatpush1.msra.mxu0 0.0
    %675 = vmatprep.subr.mxu0 0.0
    %676 = vmatpush1.msra.mxu0 0.0
    %677 = vmatprep.subr.mxu0 0.0
    %678 = vmatpush1.msra.mxu0 0.0
    %679 = vmatprep.subr.mxu0 0.0
    %680 = vmatpush1.msra.mxu0 0.0
    %681 = vmatprep.subr.mxu0 0.0
    %682 = vmatpush1.msra.mxu0 0.0
    %683 = vmatprep.subr.mxu0 0.0
    %684 = vmatpush1.msra.mxu0 0.0
    %685 = vmatprep.subr.mxu0 0.0
    %686 = vmatpush1.msra.mxu0 0.0
    %687 = vmatprep.subr.mxu0 0.0
    %688 = vmatpush1.msra.mxu0 0.0
    %689 = vmatprep.mubr.f32.mxu0 0.0
    %690 = vmatmul.mubr.f32.gmra.mrb[0].mxu0 %v623
    %v691 = vpop.f32.mrb[0].mxu0
    %v692 = vadd.f32 0.0, %v691
    %v693 = vpop.f32.mrb[0].mxu0
    %694 = vdwg.mxu0
    %v695 = vadd.f32 %v619, %v692
    %v696 = vxor.u32 %v695, 2147483648
    %v697 = vmul.f32 %v696, 1.442695
    %v698 = vpow.pop %v697
    %v699 = vadd.f32 %v698, 1.0
    %v700 = vrcp.pop %v699
    %v701 = vmul.f32 1.0, %v700
    %v702 = vtanh.pop %v695
    %v703 = vmul.f32 %v701, %v612
    %705 = vrot.lane.b32.xlu0 %v702, 64
    %v706 = vpop.permute.xlu0 %705
    %v708 = vmul.f32 %v701, %v706
    %710 = vrot.lane.b32.xlu0 %v708, 32
    %v711 = vpop.permute.xlu0 %710
    %v713 = vadd.f32 %v703, %v711
    %v714 = vtanh.pop %v713
    %716 = vrot.lane.b32.xlu0 %v714, 64
    %v717 = vpop.permute.xlu0 %716
    %v719 = vmul.f32 %v701, %v717
    %v720 = vld [vmem:[#allocation2 + $0x30] sm:$0xff]
    %722 = vrot.lane.b32.xlu0 %v719, 32
    %v723 = vpop.permute.xlu0 %722
    %v724 = vsel %vm393, %v723, 0
    %726 = vmatprep.subr.mxu0 0.0
    %727 = vmatpush1.msra.mxu0 %v409
    %728 = vmatprep.subr.mxu0 0.0
    %729 = vmatpush1.msra.mxu0 %v410
    %730 = vmatprep.subr.mxu0 0.0
    %731 = vmatpush1.msra.mxu0 %v411
    %732 = vmatprep.subr.mxu0 0.0
    %733 = vmatpush1.msra.mxu0 %v412
    %734 = vmatprep.subr.mxu0 0.0
    %735 = vmatpush1.msra.mxu0 0.0
    %736 = vmatprep.subr.mxu0 0.0
    %737 = vmatpush1.msra.mxu0 0.0
    %738 = vmatprep.subr.mxu0 0.0
    %739 = vmatpush1.msra.mxu0 0.0
    %740 = vmatprep.subr.mxu0 0.0
    %741 = vmatpush1.msra.mxu0 0.0
    %742 = vmatprep.subr.mxu0 0.0
    %743 = vmatpush1.msra.mxu0 0.0
    %744 = vmatprep.subr.mxu0 0.0
    %745 = vmatpush1.msra.mxu0 0.0
    %746 = vmatprep.subr.mxu0 0.0
    %747 = vmatpush1.msra.mxu0 0.0
    %748 = vmatprep.subr.mxu0 0.0
    %749 = vmatpush1.msra.mxu0 0.0
    %750 = vmatprep.subr.mxu0 0.0
    %751 = vmatpush1.msra.mxu0 0.0
    %752 = vmatprep.subr.mxu0 0.0
    %753 = vmatpush1.msra.mxu0 0.0
    %754 = vmatprep.subr.mxu0 0.0
    %755 = vmatpush1.msra.mxu0 0.0
    %756 = vmatprep.subr.mxu0 0.0
    %757 = vmatpush1.msra.mxu0 0.0
    %758 = vmatprep.subr.mxu0 0.0
    %759 = vmatpush1.msra.mxu0 0.0
    %760 = vmatprep.subr.mxu0 0.0
    %761 = vmatpush1.msra.mxu0 0.0
    %762 = vmatprep.subr.mxu0 0.0
    %763 = vmatpush1.msra.mxu0 0.0
    %764 = vmatprep.subr.mxu0 0.0
    %765 = vmatpush1.msra.mxu0 0.0
    %766 = vmatprep.subr.mxu0 0.0
    %767 = vmatpush1.msra.mxu0 0.0
    %768 = vmatprep.subr.mxu0 0.0
    %769 = vmatpush1.msra.mxu0 0.0
    %770 = vmatprep.subr.mxu0 0.0
    %771 = vmatpush1.msra.mxu0 0.0
    %772 = vmatprep.subr.mxu0 0.0
    %773 = vmatpush1.msra.mxu0 0.0
    %774 = vmatprep.subr.mxu0 0.0
    %775 = vmatpush1.msra.mxu0 0.0
    %776 = vmatprep.subr.mxu0 0.0
    %777 = vmatpush1.msra.mxu0 0.0
    %778 = vmatprep.subr.mxu0 0.0
    %779 = vmatpush1.msra.mxu0 0.0
    %780 = vmatprep.subr.mxu0 0.0
    %781 = vmatpush1.msra.mxu0 0.0
    %782 = vmatprep.subr.mxu0 0.0
    %783 = vmatpush1.msra.mxu0 0.0
    %784 = vmatprep.subr.mxu0 0.0
    %785 = vmatpush1.msra.mxu0 0.0
    %786 = vmatprep.subr.mxu0 0.0
    %787 = vmatpush1.msra.mxu0 0.0
    %788 = vmatprep.subr.mxu0 0.0
    %789 = vmatpush1.msra.mxu0 0.0
    %790 = vmatprep.mubr.f32.mxu0 0.0
    %791 = vmatmul.mubr.f32.gmra.mrb[0].mxu0 %v724
    %v792 = vpop.f32.mrb[0].mxu0
    %v793 = vadd.f32 0.0, %v792
    %v794 = vpop.f32.mrb[0].mxu0
    %795 = vdwg.mxu0
    %v796 = vadd.f32 %v720, %v793
    %v797 = vxor.u32 %v796, 2147483648
    %v798 = vmul.f32 %v797, 1.442695
    %v799 = vpow.pop %v798
    %v800 = vadd.f32 %v799, 1.0
    %v801 = vrcp.pop %v800
    %v802 = vmul.f32 1.0, %v801
    %v803 = vtanh.pop %v796
    %v804 = vmul.f32 %v802, %v713
    %806 = vrot.lane.b32.xlu0 %v803, 64
    %v807 = vpop.permute.xlu0 %806
    %v809 = vmul.f32 %v802, %v807
    %811 = vrot.lane.b32.xlu0 %v809, 32
    %v812 = vpop.permute.xlu0 %811
    %v814 = vadd.f32 %v804, %v812
    %v815 = vtanh.pop %v814
    %817 = vrot.lane.b32.xlu0 %v815, 64
    %v818 = vpop.permute.xlu0 %817
    %v820 = vmul.f32 %v802, %v818
    %v821 = vld [vmem:[#allocation2 + $0x40] sm:$0xff]
    %823 = vrot.lane.b32.xlu0 %v820, 32
    %v824 = vpop.permute.xlu0 %823
    %v825 = vsel %vm393, %v824, 0
    %827 = vmatprep.subr.mxu0 0.0
    %828 = vmatpush1.msra.mxu0 %v409
    %829 = vmatprep.subr.mxu0 0.0
    %830 = vmatpush1.msra.mxu0 %v410
    %831 = vmatprep.subr.mxu0 0.0
    %832 = vmatpush1.msra.mxu0 %v411
    %833 = vmatprep.subr.mxu0 0.0
    %834 = vmatpush1.msra.mxu0 %v412
    %835 = vmatprep.subr.mxu0 0.0
    %836 = vmatpush1.msra.mxu0 0.0
    %837 = vmatprep.subr.mxu0 0.0
    %838 = vmatpush1.msra.mxu0 0.0
    %839 = vmatprep.subr.mxu0 0.0
    %840 = vmatpush1.msra.mxu0 0.0
    %841 = vmatprep.subr.mxu0 0.0
    %842 = vmatpush1.msra.mxu0 0.0
    %843 = vmatprep.subr.mxu0 0.0
    %844 = vmatpush1.msra.mxu0 0.0
    %845 = vmatprep.subr.mxu0 0.0
    %846 = vmatpush1.msra.mxu0 0.0
    %847 = vmatprep.subr.mxu0 0.0
    %848 = vmatpush1.msra.mxu0 0.0
    %849 = vmatprep.subr.mxu0 0.0
    %850 = vmatpush1.msra.mxu0 0.0
    %851 = vmatprep.subr.mxu0 0.0
    %852 = vmatpush1.msra.mxu0 0.0
    %853 = vmatprep.subr.mxu0 0.0
    %854 = vmatpush1.msra.mxu0 0.0
    %855 = vmatprep.subr.mxu0 0.0
    %856 = vmatpush1.msra.mxu0 0.0
    %857 = vmatprep.subr.mxu0 0.0
    %858 = vmatpush1.msra.mxu0 0.0
    %859 = vmatprep.subr.mxu0 0.0
    %860 = vmatpush1.msra.mxu0 0.0
    %861 = vmatprep.subr.mxu0 0.0
    %862 = vmatpush1.msra.mxu0 0.0
    %863 = vmatprep.subr.mxu0 0.0
    %864 = vmatpush1.msra.mxu0 0.0
    %865 = vmatprep.subr.mxu0 0.0
    %866 = vmatpush1.msra.mxu0 0.0
    %867 = vmatprep.subr.mxu0 0.0
    %868 = vmatpush1.msra.mxu0 0.0
    %869 = vmatprep.subr.mxu0 0.0
    %870 = vmatpush1.msra.mxu0 0.0
    %871 = vmatprep.subr.mxu0 0.0
    %872 = vmatpush1.msra.mxu0 0.0
    %873 = vmatprep.subr.mxu0 0.0
    %874 = vmatpush1.msra.mxu0 0.0
    %875 = vmatprep.subr.mxu0 0.0
    %876 = vmatpush1.msra.mxu0 0.0
    %877 = vmatprep.subr.mxu0 0.0
    %878 = vmatpush1.msra.mxu0 0.0
    %879 = vmatprep.subr.mxu0 0.0
    %880 = vmatpush1.msra.mxu0 0.0
    %881 = vmatprep.subr.mxu0 0.0
    %882 = vmatpush1.msra.mxu0 0.0
    %883 = vmatprep.subr.mxu0 0.0
    %884 = vmatpush1.msra.mxu0 0.0
    %885 = vmatprep.subr.mxu0 0.0
    %886 = vmatpush1.msra.mxu0 0.0
    %887 = vmatprep.subr.mxu0 0.0
    %888 = vmatpush1.msra.mxu0 0.0
    %889 = vmatprep.subr.mxu0 0.0
    %890 = vmatpush1.msra.mxu0 0.0
    %891 = vmatprep.mubr.f32.mxu0 0.0
    %892 = vmatmul.mubr.f32.gmra.mrb[0].mxu0 %v825
    %v893 = vpop.f32.mrb[0].mxu0
    %v894 = vadd.f32 0.0, %v893
    %v895 = vpop.f32.mrb[0].mxu0
    %896 = vdwg.mxu0
    %v897 = vadd.f32 %v821, %v894
    %v898 = vxor.u32 %v897, 2147483648
    %v899 = vmul.f32 %v898, 1.442695
    %v900 = vpow.pop %v899
    %v901 = vadd.f32 %v900, 1.0
    %v902 = vrcp.pop %v901
    %v903 = vmul.f32 1.0, %v902
    %v904 = vtanh.pop %v897
    %v905 = vmul.f32 %v903, %v814
    %907 = vrot.lane.b32.xlu0 %v904, 64
    %v908 = vpop.permute.xlu0 %907
    %v910 = vmul.f32 %v903, %v908
    %912 = vrot.lane.b32.xlu0 %v910, 32
    %v913 = vpop.permute.xlu0 %912
    %v915 = vadd.f32 %v905, %v913
    %v916 = vtanh.pop %v915
    %918 = vrot.lane.b32.xlu0 %v916, 64
    %v919 = vpop.permute.xlu0 %918
    %v921 = vmul.f32 %v903, %v919
    %v922 = vld [vmem:[#allocation2 + $0x50] sm:$0xff]
    %924 = vrot.lane.b32.xlu0 %v921, 32
    %v925 = vpop.permute.xlu0 %924
    %v926 = vsel %vm393, %v925, 0
    %928 = vmatprep.subr.mxu0 0.0
    %929 = vmatpush1.msra.mxu0 %v409
    %930 = vmatprep.subr.mxu0 0.0
    %931 = vmatpush1.msra.mxu0 %v410
    %932 = vmatprep.subr.mxu0 0.0
    %933 = vmatpush1.msra.mxu0 %v411
    %934 = vmatprep.subr.mxu0 0.0
    %935 = vmatpush1.msra.mxu0 %v412
    %936 = vmatprep.subr.mxu0 0.0
    %937 = vmatpush1.msra.mxu0 0.0
    %938 = vmatprep.subr.mxu0 0.0
    %939 = vmatpush1.msra.mxu0 0.0
    %940 = vmatprep.subr.mxu0 0.0
    %941 = vmatpush1.msra.mxu0 0.0
    %942 = vmatprep.subr.mxu0 0.0
    %943 = vmatpush1.msra.mxu0 0.0
    %944 = vmatprep.subr.mxu0 0.0
    %945 = vmatpush1.msra.mxu0 0.0
    %946 = vmatprep.subr.mxu0 0.0
    %947 = vmatpush1.msra.mxu0 0.0
    %948 = vmatprep.subr.mxu0 0.0
    %949 = vmatpush1.msra.mxu0 0.0
    %950 = vmatprep.subr.mxu0 0.0
    %951 = vmatpush1.msra.mxu0 0.0
    %952 = vmatprep.subr.mxu0 0.0
    %953 = vmatpush1.msra.mxu0 0.0
    %954 = vmatprep.subr.mxu0 0.0
    %955 = vmatpush1.msra.mxu0 0.0
    %956 = vmatprep.subr.mxu0 0.0
    %957 = vmatpush1.msra.mxu0 0.0
    %958 = vmatprep.subr.mxu0 0.0
    %959 = vmatpush1.msra.mxu0 0.0
    %960 = vmatprep.subr.mxu0 0.0
    %961 = vmatpush1.msra.mxu0 0.0
    %962 = vmatprep.subr.mxu0 0.0
    %963 = vmatpush1.msra.mxu0 0.0
    %964 = vmatprep.subr.mxu0 0.0
    %965 = vmatpush1.msra.mxu0 0.0
    %966 = vmatprep.subr.mxu0 0.0
    %967 = vmatpush1.msra.mxu0 0.0
    %968 = vmatprep.subr.mxu0 0.0
    %969 = vmatpush1.msra.mxu0 0.0
    %970 = vmatprep.subr.mxu0 0.0
    %971 = vmatpush1.msra.mxu0 0.0
    %972 = vmatprep.subr.mxu0 0.0
    %973 = vmatpush1.msra.mxu0 0.0
    %974 = vmatprep.subr.mxu0 0.0
    %975 = vmatpush1.msra.mxu0 0.0
    %976 = vmatprep.subr.mxu0 0.0
    %977 = vmatpush1.msra.mxu0 0.0
    %978 = vmatprep.subr.mxu0 0.0
    %979 = vmatpush1.msra.mxu0 0.0
    %980 = vmatprep.subr.mxu0 0.0
    %981 = vmatpush1.msra.mxu0 0.0
    %982 = vmatprep.subr.mxu0 0.0
    %983 = vmatpush1.msra.mxu0 0.0
    %984 = vmatprep.subr.mxu0 0.0
    %985 = vmatpush1.msra.mxu0 0.0
    %986 = vmatprep.subr.mxu0 0.0
    %987 = vmatpush1.msra.mxu0 0.0
    %988 = vmatprep.subr.mxu0 0.0
    %989 = vmatpush1.msra.mxu0 0.0
    %990 = vmatprep.subr.mxu0 0.0
    %991 = vmatpush1.msra.mxu0 0.0
    %992 = vmatprep.mubr.f32.mxu0 0.0
    %993 = vmatmul.mubr.f32.gmra.mrb[0].mxu0 %v926
    %v994 = vpop.f32.mrb[0].mxu0
    %v995 = vadd.f32 0.0, %v994
    %v996 = vpop.f32.mrb[0].mxu0
    %997 = vdwg.mxu0
    %v998 = vadd.f32 %v922, %v995
    %v999 = vxor.u32 %v998, 2147483648
    %v1000 = vmul.f32 %v999, 1.442695
    %v1001 = vpow.pop %v1000
    %v1002 = vadd.f32 %v1001, 1.0
    %v1003 = vrcp.pop %v1002
    %v1004 = vmul.f32 1.0, %v1003
    %v1005 = vtanh.pop %v998
    %v1006 = vmul.f32 %v1004, %v915
    %1008 = vrot.lane.b32.xlu0 %v1005, 64
    %v1009 = vpop.permute.xlu0 %1008
    %v1011 = vmul.f32 %v1004, %v1009
    %1013 = vrot.lane.b32.xlu0 %v1011, 32
    %v1014 = vpop.permute.xlu0 %1013
    %v1016 = vadd.f32 %v1006, %v1014
    %v1017 = vtanh.pop %v1016
    %1019 = vrot.lane.b32.xlu0 %v1017, 64
    %v1020 = vpop.permute.xlu0 %1019
    %v1022 = vmul.f32 %v1004, %v1020
    %v1023 = vld [vmem:[#allocation2 + $0x60] sm:$0xff]
    %1025 = vrot.lane.b32.xlu0 %v1022, 32
    %v1026 = vpop.permute.xlu0 %1025
    %v1027 = vsel %vm393, %v1026, 0
    %1029 = vmatprep.subr.mxu0 0.0
    %1030 = vmatpush1.msra.mxu0 %v409
    %1031 = vmatprep.subr.mxu0 0.0
    %1032 = vmatpush1.msra.mxu0 %v410
    %1033 = vmatprep.subr.mxu0 0.0
    %1034 = vmatpush1.msra.mxu0 %v411
    %1035 = vmatprep.subr.mxu0 0.0
    %1036 = vmatpush1.msra.mxu0 %v412
    %1037 = vmatprep.subr.mxu0 0.0
    %1038 = vmatpush1.msra.mxu0 0.0
    %1039 = vmatprep.subr.mxu0 0.0
    %1040 = vmatpush1.msra.mxu0 0.0
    %1041 = vmatprep.subr.mxu0 0.0
    %1042 = vmatpush1.msra.mxu0 0.0
    %1043 = vmatprep.subr.mxu0 0.0
    %1044 = vmatpush1.msra.mxu0 0.0
    %1045 = vmatprep.subr.mxu0 0.0
    %1046 = vmatpush1.msra.mxu0 0.0
    %1047 = vmatprep.subr.mxu0 0.0
    %1048 = vmatpush1.msra.mxu0 0.0
    %1049 = vmatprep.subr.mxu0 0.0
    %1050 = vmatpush1.msra.mxu0 0.0
    %1051 = vmatprep.subr.mxu0 0.0
    %1052 = vmatpush1.msra.mxu0 0.0
    %1053 = vmatprep.subr.mxu0 0.0
    %1054 = vmatpush1.msra.mxu0 0.0
    %1055 = vmatprep.subr.mxu0 0.0
    %1056 = vmatpush1.msra.mxu0 0.0
    %1057 = vmatprep.subr.mxu0 0.0
    %1058 = vmatpush1.msra.mxu0 0.0
    %1059 = vmatprep.subr.mxu0 0.0
    %1060 = vmatpush1.msra.mxu0 0.0
    %1061 = vmatprep.subr.mxu0 0.0
    %1062 = vmatpush1.msra.mxu0 0.0
    %1063 = vmatprep.subr.mxu0 0.0
    %1064 = vmatpush1.msra.mxu0 0.0
    %1065 = vmatprep.subr.mxu0 0.0
    %1066 = vmatpush1.msra.mxu0 0.0
    %1067 = vmatprep.subr.mxu0 0.0
    %1068 = vmatpush1.msra.mxu0 0.0
    %1069 = vmatprep.subr.mxu0 0.0
    %1070 = vmatpush1.msra.mxu0 0.0
    %1071 = vmatprep.subr.mxu0 0.0
    %1072 = vmatpush1.msra.mxu0 0.0
    %1073 = vmatprep.subr.mxu0 0.0
    %1074 = vmatpush1.msra.mxu0 0.0
    %1075 = vmatprep.subr.mxu0 0.0
    %1076 = vmatpush1.msra.mxu0 0.0
    %1077 = vmatprep.subr.mxu0 0.0
    %1078 = vmatpush1.msra.mxu0 0.0
    %1079 = vmatprep.subr.mxu0 0.0
    %1080 = vmatpush1.msra.mxu0 0.0
    %1081 = vmatprep.subr.mxu0 0.0
    %1082 = vmatpush1.msra.mxu0 0.0
    %1083 = vmatprep.subr.mxu0 0.0
    %1084 = vmatpush1.msra.mxu0 0.0
    %1085 = vmatprep.subr.mxu0 0.0
    %1086 = vmatpush1.msra.mxu0 0.0
    %1087 = vmatprep.subr.mxu0 0.0
    %1088 = vmatpush1.msra.mxu0 0.0
    %1089 = vmatprep.subr.mxu0 0.0
    %1090 = vmatpush1.msra.mxu0 0.0
    %1091 = vmatprep.subr.mxu0 0.0
    %1092 = vmatpush1.msra.mxu0 0.0
    %1093 = vmatprep.mubr.f32.mxu0 0.0
    %1094 = vmatmul.mubr.f32.gmra.mrb[0].mxu0 %v1027
    %v1095 = vpop.f32.mrb[0].mxu0
    %v1096 = vadd.f32 0.0, %v1095
    %v1097 = vpop.f32.mrb[0].mxu0
    %1098 = vdwg.mxu0
    %v1099 = vadd.f32 %v1023, %v1096
    %v1100 = vxor.u32 %v1099, 2147483648
    %v1101 = vmul.f32 %v1100, 1.442695
    %v1102 = vpow.pop %v1101
    %v1103 = vadd.f32 %v1102, 1.0
    %v1104 = vrcp.pop %v1103
    %v1105 = vmul.f32 1.0, %v1104
    %v1106 = vtanh.pop %v1099
    %v1107 = vmul.f32 %v1105, %v1016
    %1109 = vrot.lane.b32.xlu0 %v1106, 64
    %v1110 = vpop.permute.xlu0 %1109
    %v1112 = vmul.f32 %v1105, %v1110
    %1114 = vrot.lane.b32.xlu0 %v1112, 32
    %v1115 = vpop.permute.xlu0 %1114
    %v1117 = vadd.f32 %v1107, %v1115
    %v1118 = vtanh.pop %v1117
    %1120 = vrot.lane.b32.xlu0 %v1118, 64
    %v1121 = vpop.permute.xlu0 %1120
    %v1123 = vmul.f32 %v1105, %v1121
    %v1124 = vld [vmem:[#allocation2 + $0x70] sm:$0xff]
    %1126 = vrot.lane.b32.xlu0 %v1123, 32
    %v1127 = vpop.permute.xlu0 %1126
    %v1128 = vsel %vm393, %v1127, 0
    %1130 = vmatprep.subr.mxu0 0.0
    %1131 = vmatpush1.msra.mxu0 %v409
    %1132 = vmatprep.subr.mxu0 0.0
    %1133 = vmatpush1.msra.mxu0 %v410
    %1134 = vmatprep.subr.mxu0 0.0
    %1135 = vmatpush1.msra.mxu0 %v411
    %1136 = vmatprep.subr.mxu0 0.0
    %1137 = vmatpush1.msra.mxu0 %v412
    %1138 = vmatprep.subr.mxu0 0.0
    %1139 = vmatpush1.msra.mxu0 0.0
    %1140 = vmatprep.subr.mxu0 0.0
    %1141 = vmatpush1.msra.mxu0 0.0
    %1142 = vmatprep.subr.mxu0 0.0
    %1143 = vmatpush1.msra.mxu0 0.0
    %1144 = vmatprep.subr.mxu0 0.0
    %1145 = vmatpush1.msra.mxu0 0.0
    %1146 = vmatprep.subr.mxu0 0.0
    %1147 = vmatpush1.msra.mxu0 0.0
    %1148 = vmatprep.subr.mxu0 0.0
    %1149 = vmatpush1.msra.mxu0 0.0
    %1150 = vmatprep.subr.mxu0 0.0
    %1151 = vmatpush1.msra.mxu0 0.0
    %1152 = vmatprep.subr.mxu0 0.0
    %1153 = vmatpush1.msra.mxu0 0.0
    %1154 = vmatprep.subr.mxu0 0.0
    %1155 = vmatpush1.msra.mxu0 0.0
    %1156 = vmatprep.subr.mxu0 0.0
    %1157 = vmatpush1.msra.mxu0 0.0
    %1158 = vmatprep.subr.mxu0 0.0
    %1159 = vmatpush1.msra.mxu0 0.0
    %1160 = vmatprep.subr.mxu0 0.0
    %1161 = vmatpush1.msra.mxu0 0.0
    %1162 = vmatprep.subr.mxu0 0.0
    %1163 = vmatpush1.msra.mxu0 0.0
    %1164 = vmatprep.subr.mxu0 0.0
    %1165 = vmatpush1.msra.mxu0 0.0
    %1166 = vmatprep.subr.mxu0 0.0
    %1167 = vmatpush1.msra.mxu0 0.0
    %1168 = vmatprep.subr.mxu0 0.0
    %1169 = vmatpush1.msra.mxu0 0.0
    %1170 = vmatprep.subr.mxu0 0.0
    %1171 = vmatpush1.msra.mxu0 0.0
    %1172 = vmatprep.subr.mxu0 0.0
    %1173 = vmatpush1.msra.mxu0 0.0
    %1174 = vmatprep.subr.mxu0 0.0
    %1175 = vmatpush1.msra.mxu0 0.0
    %1176 = vmatprep.subr.mxu0 0.0
    %1177 = vmatpush1.msra.mxu0 0.0
    %1178 = vmatprep.subr.mxu0 0.0
    %1179 = vmatpush1.msra.mxu0 0.0
    %1180 = vmatprep.subr.mxu0 0.0
    %1181 = vmatpush1.msra.mxu0 0.0
    %1182 = vmatprep.subr.mxu0 0.0
    %1183 = vmatpush1.msra.mxu0 0.0
    %1184 = vmatprep.subr.mxu0 0.0
    %1185 = vmatpush1.msra.mxu0 0.0
    %1186 = vmatprep.subr.mxu0 0.0
    %1187 = vmatpush1.msra.mxu0 0.0
    %1188 = vmatprep.subr.mxu0 0.0
    %1189 = vmatpush1.msra.mxu0 0.0
    %1190 = vmatprep.subr.mxu0 0.0
    %1191 = vmatpush1.msra.mxu0 0.0
    %1192 = vmatprep.subr.mxu0 0.0
    %1193 = vmatpush1.msra.mxu0 0.0
    %1194 = vmatprep.mubr.f32.mxu0 0.0
    %1195 = vmatmul.mubr.f32.gmra.mrb[0].mxu0 %v1128
    %v1196 = vpop.f32.mrb[0].mxu0
    %v1197 = vadd.f32 0.0, %v1196
    %v1198 = vpop.f32.mrb[0].mxu0
    %1199 = vdwg.mxu0
    %v1200 = vadd.f32 %v1124, %v1197
    %v1201 = vxor.u32 %v1200, 2147483648
    %v1202 = vmul.f32 %v1201, 1.442695
    %v1203 = vpow.pop %v1202
    %v1204 = vadd.f32 %v1203, 1.0
    %v1205 = vrcp.pop %v1204
    %v1206 = vmul.f32 1.0, %v1205
    %v1207 = vtanh.pop %v1200
    %v1208 = vmul.f32 %v1206, %v1117
    %1210 = vrot.lane.b32.xlu0 %v1207, 64
    %v1211 = vpop.permute.xlu0 %1210
    %v1213 = vmul.f32 %v1206, %v1211
    %1215 = vrot.lane.b32.xlu0 %v1213, 32
    %v1216 = vpop.permute.xlu0 %1215
    %v1218 = vadd.f32 %v1208, %v1216
    %v1219 = vtanh.pop %v1218
    %1221 = vrot.lane.b32.xlu0 %v1219, 64
    %v1222 = vpop.permute.xlu0 %1221
    %v1224 = vmul.f32 %v1206, %v1222
    %1226 = vrot.lane.b32.xlu0 %v1224, 32
    %v1227 = vpop.permute.xlu0 %1226
    %1229 = vst.msk [vmem:[%s12] sm:$0xff] %vm393, %v1227
    %1231 = vrot.lane.b32.xlu0 %v1218, 96
    %v1232 = vpop.permute.xlu0 %1231
    %1234 = vst.msk [vmem:[%s13] sm:$0xff] %vm393, %v1232
    %v1235 = vld [vmem:[#allocation2 + $0x8] sm:$0xff]
    %v1236 = vld [vmem:[#allocation2 + $0x18] sm:$0xff]
    %v1237 = vld [vmem:[#allocation2 + $0x28] sm:$0xff]
    %v1238 = vld [vmem:[#allocation2 + $0x38] sm:$0xff]
    %v1239 = vld [vmem:[#allocation2 + $0x48] sm:$0xff]
    %v1240 = vld [vmem:[#allocation2 + $0x58] sm:$0xff]
    %v1241 = vld [vmem:[#allocation2 + $0x68] sm:$0xff]
    %v1242 = vld [vmem:[#allocation2 + $0x78] sm:$0xff]
    %v1243 = vld [vmem:[%s8] sm:$0xff]
    %v1244 = vld [vmem:[%s8 + $0x8] sm:$0xff]
    %v1245 = vld [vmem:[%s8 + $0x10] sm:$0xff]
    %v1246 = vld [vmem:[%s8 + $0x18] sm:$0xff]
    %v1247 = vsel %vm393, %v1227, 0
    %1249 = vmatprep.subr.mxu0 0.0
    %1250 = vmatpush1.msra.mxu0 %v1243
    %1251 = vmatprep.subr.mxu0 0.0
    %1252 = vmatpush1.msra.mxu0 %v1244
    %1253 = vmatprep.subr.mxu0 0.0
    %1254 = vmatpush1.msra.mxu0 %v1245
    %1255 = vmatprep.subr.mxu0 0.0
    %1256 = vmatpush1.msra.mxu0 %v1246
    %1257 = vmatprep.subr.mxu0 0.0
    %1258 = vmatpush1.msra.mxu0 0.0
    %1259 = vmatprep.subr.mxu0 0.0
    %1260 = vmatpush1.msra.mxu0 0.0
    %1261 = vmatprep.subr.mxu0 0.0
    %1262 = vmatpush1.msra.mxu0 0.0
    %1263 = vmatprep.subr.mxu0 0.0
    %1264 = vmatpush1.msra.mxu0 0.0
    %1265 = vmatprep.subr.mxu0 0.0
    %1266 = vmatpush1.msra.mxu0 0.0
    %1267 = vmatprep.subr.mxu0 0.0
    %1268 = vmatpush1.msra.mxu0 0.0
    %1269 = vmatprep.subr.mxu0 0.0
    %1270 = vmatpush1.msra.mxu0 0.0
    %1271 = vmatprep.subr.mxu0 0.0
    %1272 = vmatpush1.msra.mxu0 0.0
    %1273 = vmatprep.subr.mxu0 0.0
    %1274 = vmatpush1.msra.mxu0 0.0
    %1275 = vmatprep.subr.mxu0 0.0
    %1276 = vmatpush1.msra.mxu0 0.0
    %1277 = vmatprep.subr.mxu0 0.0
    %1278 = vmatpush1.msra.mxu0 0.0
    %1279 = vmatprep.subr.mxu0 0.0
    %1280 = vmatpush1.msra.mxu0 0.0
    %1281 = vmatprep.subr.mxu0 0.0
    %1282 = vmatpush1.msra.mxu0 0.0
    %1283 = vmatprep.subr.mxu0 0.0
    %1284 = vmatpush1.msra.mxu0 0.0
    %1285 = vmatprep.subr.mxu0 0.0
    %1286 = vmatpush1.msra.mxu0 0.0
    %1287 = vmatprep.subr.mxu0 0.0
    %1288 = vmatpush1.msra.mxu0 0.0
    %1289 = vmatprep.subr.mxu0 0.0
    %1290 = vmatpush1.msra.mxu0 0.0
    %1291 = vmatprep.subr.mxu0 0.0
    %1292 = vmatpush1.msra.mxu0 0.0
    %1293 = vmatprep.subr.mxu0 0.0
    %1294 = vmatpush1.msra.mxu0 0.0
    %1295 = vmatprep.subr.mxu0 0.0
    %1296 = vmatpush1.msra.mxu0 0.0
    %1297 = vmatprep.subr.mxu0 0.0
    %1298 = vmatpush1.msra.mxu0 0.0
    %1299 = vmatprep.subr.mxu0 0.0
    %1300 = vmatpush1.msra.mxu0 0.0
    %1301 = vmatprep.subr.mxu0 0.0
    %1302 = vmatpush1.msra.mxu0 0.0
    %1303 = vmatprep.subr.mxu0 0.0
    %1304 = vmatpush1.msra.mxu0 0.0
    %1305 = vmatprep.subr.mxu0 0.0
    %1306 = vmatpush1.msra.mxu0 0.0
    %1307 = vmatprep.subr.mxu0 0.0
    %1308 = vmatpush1.msra.mxu0 0.0
    %1309 = vmatprep.subr.mxu0 0.0
    %1310 = vmatpush1.msra.mxu0 0.0
    %1311 = vmatprep.subr.mxu0 0.0
    %1312 = vmatpush1.msra.mxu0 0.0
    %1313 = vmatprep.mubr.f32.mxu0 0.0
    %1314 = vmatmul.mubr.f32.gmra.mrb[0].mxu0 %v522
    %v1315 = vpop.f32.mrb[0].mxu0
    %v1316 = vadd.f32 0.0, %v1315
    %v1317 = vpop.f32.mrb[0].mxu0
    %1318 = vmatprep.mubr.f32.mxu0 0.0
    %1319 = vmatmul.mubr.f32.gmra.mrb[0].mxu0 %v623
    %v1320 = vpop.f32.mrb[0].mxu0
    %v1321 = vadd.f32 0.0, %v1320
    %v1322 = vpop.f32.mrb[0].mxu0
    %1323 = vmatprep.mubr.f32.mxu0 0.0
    %1324 = vmatmul.mubr.f32.gmra.mrb[0].mxu0 %v724
    %v1325 = vpop.f32.mrb[0].mxu0
    %v1326 = vadd.f32 0.0, %v1325
    %v1327 = vpop.f32.mrb[0].mxu0
    %1328 = vmatprep.mubr.f32.mxu0 0.0
    %1329 = vmatmul.mubr.f32.gmra.mrb[0].mxu0 %v825
    %v1330 = vpop.f32.mrb[0].mxu0
    %v1331 = vadd.f32 0.0, %v1330
    %v1332 = vpop.f32.mrb[0].mxu0
    %1333 = vmatprep.mubr.f32.mxu0 0.0
    %1334 = vmatmul.mubr.f32.gmra.mrb[0].mxu0 %v926
    %v1335 = vpop.f32.mrb[0].mxu0
    %v1336 = vadd.f32 0.0, %v1335
    %v1337 = vpop.f32.mrb[0].mxu0
    %1338 = vmatprep.mubr.f32.mxu0 0.0
    %1339 = vmatmul.mubr.f32.gmra.mrb[0].mxu0 %v1027
    %v1340 = vpop.f32.mrb[0].mxu0
    %v1341 = vadd.f32 0.0, %v1340
    %v1342 = vpop.f32.mrb[0].mxu0
    %1343 = vmatprep.mubr.f32.mxu0 0.0
    %1344 = vmatmul.mubr.f32.gmra.mrb[0].mxu0 %v1128
    %v1345 = vpop.f32.mrb[0].mxu0
    %v1346 = vadd.f32 0.0, %v1345
    %v1347 = vpop.f32.mrb[0].mxu0
    %1348 = vmatprep.mubr.f32.mxu0 0.0
    %1349 = vmatmul.mubr.f32.gmra.mrb[0].mxu0 %v1247
    %v1350 = vpop.f32.mrb[0].mxu0
    %v1351 = vadd.f32 0.0, %v1350
    %v1352 = vpop.f32.mrb[0].mxu0
    %1353 = vdwg.mxu0
    %v1354 = vadd.f32 %v1235, %v1316
    %v1355 = vadd.f32 %v1236, %v1321
    %v1356 = vadd.f32 %v1237, %v1326
    %v1357 = vadd.f32 %v1238, %v1331
    %v1358 = vadd.f32 %v1239, %v1336
    %v1359 = vadd.f32 %v1240, %v1341
    %v1360 = vadd.f32 %v1241, %v1346
    %v1361 = vadd.f32 %v1242, %v1351
    %v1362 = vmax.f32 %v1354, 0.0
    %v1363 = vmax.f32 %v1355, 0.0
    %v1364 = vmax.f32 %v1356, 0.0
    %v1365 = vmax.f32 %v1357, 0.0
    %v1366 = vmax.f32 %v1358, 0.0
    %v1367 = vmax.f32 %v1359, 0.0
    %v1368 = vmax.f32 %v1360, 0.0
    %v1369 = vmax.f32 %v1361, 0.0
    %v1370 = vld [vmem:[#allocation6] sm:$0x1]
    %v1372 = vlaneseq
    %v1373 = vshrl.u32 %v1372, 7
    %v1374 = vsub.s32 0, %v1373
    %v1375 = vrot.slane %v1370, %v1374
    %v1377 = vmul.f32 %v1362, %v1375
    %v1378 = vmul.f32 %v1363, %v1375
    %v1379 = vmul.f32 %v1364, %v1375
    %v1380 = vmul.f32 %v1365, %v1375
    %v1381 = vmul.f32 %v1366, %v1375
    %v1382 = vmul.f32 %v1367, %v1375
    %v1383 = vmul.f32 %v1368, %v1375
    %v1384 = vmul.f32 %v1369, %v1375
    %v1385 = vsel %vm393, %v1377, 0.0
    %1386 = vadd.xlane.f32.xlu0 %v1385
    %v1387 = vpop.xlane.xlu0 %1386
    %v1388 = vsel %vm393, %v1378, 0.0
    %1389 = vadd.xlane.f32.xlu0 %v1388
    %v1390 = vpop.xlane.xlu0 %1389
    %v1391 = vsel %vm393, %v1379, 0.0
    %1392 = vadd.xlane.f32.xlu0 %v1391
    %v1393 = vpop.xlane.xlu0 %1392
    %v1394 = vsel %vm393, %v1380, 0.0
    %1395 = vadd.xlane.f32.xlu0 %v1394
    %v1396 = vpop.xlane.xlu0 %1395
    %v1397 = vsel %vm393, %v1381, 0.0
    %1398 = vadd.xlane.f32.xlu0 %v1397
    %v1399 = vpop.xlane.xlu0 %1398
    %v1400 = vsel %vm393, %v1382, 0.0
    %1401 = vadd.xlane.f32.xlu0 %v1400
    %v1402 = vpop.xlane.xlu0 %1401
    %v1403 = vsel %vm393, %v1383, 0.0
    %1404 = vadd.xlane.f32.xlu0 %v1403
    %v1405 = vpop.xlane.xlu0 %1404
    %v1406 = vsel %vm393, %v1384, 0.0
    %1407 = vadd.xlane.f32.xlu0 %v1406
    %v1408 = vpop.xlane.xlu0 %1407
    %v1409 = vld [vmem:[#allocation3] sm:$0x1]
    %v1411 = vlaneseq
    %v1412 = vshrl.u32 %v1411, 7
    %v1413 = vsub.s32 0, %v1412
    %v1414 = vrot.slane %v1409, %v1413
    %v1416 = vadd.f32 %v1387, %v1414
    %v1417 = vadd.f32 %v1390, %v1414
    %v1418 = vadd.f32 %v1393, %v1414
    %v1419 = vadd.f32 %v1396, %v1414
    %v1420 = vadd.f32 %v1399, %v1414
    %v1421 = vadd.f32 %v1402, %v1414
    %v1422 = vadd.f32 %v1405, %v1414
    %v1423 = vadd.f32 %v1408, %v1414
    %vm1424 = vcmask 7168
    %1425 = vst.msk [vmem:[%s11] sm:$0xff] %vm1424, %v1416
    %1426 = vst.msk [vmem:[%s11 + $0x8] sm:$0xff] %vm1424, %v1417
    %1427 = vst.msk [vmem:[%s11 + $0x10] sm:$0xff] %vm1424, %v1418
    %1428 = vst.msk [vmem:[%s11 + $0x18] sm:$0xff] %vm1424, %v1419
    %1429 = vst.msk [vmem:[%s11 + $0x20] sm:$0xff] %vm1424, %v1420
    %1430 = vst.msk [vmem:[%s11 + $0x28] sm:$0xff] %vm1424, %v1421
    %1431 = vst.msk [vmem:[%s11 + $0x30] sm:$0xff] %vm1424, %v1422
    %1432 = vst.msk [vmem:[%s11 + $0x38] sm:$0xff] %vm1424, %v1423
    // Predicated region
    $region54: #{critic_forward.1} parent=1 // pred_check
      _
    $region55: #{critic_forward.1} parent=1 // pred_check_branch
      %1434 = sbr.rel (0) target = $region57
    $region56: #{critic_forward.1} parent=1 // pred_region
      _
    $region57: #{critic_forward.1} parent=1 // pred_fallthru
      _
    // Predicated region
    $region58: #{critic_forward.1} parent=1 // pred_check
      _
    $region59: #{critic_forward.1} parent=1 // pred_check_branch
      %1436 = sbr.rel (0) target = $region61
    $region60: #{critic_forward.1} parent=1 // pred_region
      _
    $region61: #{critic_forward.1} parent=1 // pred_fallthru
      _
    // Predicated region
    $region62: #{critic_forward.1} parent=1 // pred_check
      _
    $region63: #{critic_forward.1} parent=1 // pred_check_branch
      %1438 = sbr.rel (0) target = $region65
    $region64: #{critic_forward.1} parent=1 // pred_region
      _
    $region65: #{critic_forward.1} parent=1 // pred_fallthru
      _
    // Predicated region
    $region66: #{critic_forward.1} parent=1 // pred_check
      _
    $region67: #{critic_forward.1} parent=1 // pred_check_branch
      %1440 = sbr.rel (0) target = $region69
    $region68: #{critic_forward.1} parent=1 // pred_region
      _
    $region69: #{critic_forward.1} parent=1 // pred_fallthru
      _
    // Predicated region
    $region70: #{critic_forward.1} parent=1 // pred_check
      _
    $region71: #{critic_forward.1} parent=1 // pred_check_branch
      %1442 = sbr.rel (0) target = $region73
    $region72: #{critic_forward.1} parent=1 // pred_region
      _
    $region73: #{critic_forward.1} parent=1 // pred_fallthru
      _
    // Predicated region
    $region74: #{critic_forward.1} parent=1 // pred_check
      _
    $region75: #{critic_forward.1} parent=1 // pred_check_branch
      %1444 = sbr.rel (0) target = $region77
    $region76: #{critic_forward.1} parent=1 // pred_region
      _
    $region77: #{critic_forward.1} parent=1 // pred_fallthru
      _
    %1445 = vsyncpa [#allocation5], 1
    %1446 = vsyncpa [#allocation7], 1

</llo_original>
